<compile_context>
chip_gen: v6e
topology: v6e:2x2x1
jax: 0.10.0
libtpu: 0.0.40
codegen_flags: <defaults>
</compile_context>

<pallas_src>
import jax
import jax.numpy as jnp
from jax.experimental import pallas as pl
from jax.experimental.pallas import tpu as pltpu

LANE = 128        # lane-padded feature width for every layer
LN_EPS = 1e-5     # matches torch.nn.LayerNorm default

# ---------------------------------------------------------------------------
# CriticNetwork configuration (synthetic, small)
# ---------------------------------------------------------------------------
HA_STATE_DIM = 20              # input dim of the (stand-in) HumanAvoidanceNetwork
PT_INPUT_SIZE = 16             # config_master.config_PT...input_size
SHARED_LATENT_DIM = 32         # config_model.shared_latent_space
FUSING_LAYERS = [64]
SIZE_OF_FUSED_LAYERS = 32
FUSING_LAYERS_WITH_ACTION = [64]
LOOKBACK = 4                   # additional_input = lookback * 2 = 8
USE_TIME = False
ACTION_DIM = 2

# Packed weight-slice indices, tensor W has shape (N_W, 128, 128) bf16.
(W_HA1, W_HA2, W_PT1, W_PT2,
 W_FU1_H, W_FU1_P, W_FU2,
 W_FA1_X, W_FA1_A, W_FA2,
 W_EX1_X, W_EX1_V, W_EX2, W_EX3) = range(14)
N_W = 14
# Packed bias rows, tensor B has shape (N_B, 128) f32.
(B_HA1, B_HA2, B_PT1, B_PT2, B_FU1, B_FU2,
 B_FA1, B_FA2, B_EX1, B_EX2, B_EX3) = range(11)
N_B = 11
# LayerNorm gamma/beta rows (extra_MLP last layer has no LN): (N_LN, 128) f32.
N_LN = 10


# ---------------------------------------------------------------------------
# Fused whole-network kernel
# ---------------------------------------------------------------------------
def _critic_kernel(xha_ref, xpt_ref, act_ref, vel_ref,
                   w_ref, b_ref, g_ref, bt_ref, o_ref):
    def dot(x, wi):
        # bf16 x bf16 on the MXU, f32 accumulation.
        return jnp.dot(x.astype(jnp.bfloat16), w_ref[wi],
                       preferred_element_type=jnp.float32)

    def bias_ln_relu(y, bi, ln_i, n_real, relu=True):
        y = y + b_ref[pl.ds(bi, 1), :]
        if ln_i is not None:
            # One-pass statistics over the REAL columns only (padded lanes of
            # y are exactly zero, so full-lane sums are correct; divide by
            # n_real, not 128).
            inv_n = 1.0 / float(n_real)
            s1 = jnp.sum(y, axis=-1, keepdims=True)
            s2 = jnp.sum(y * y, axis=-1, keepdims=True)
            mean = s1 * inv_n
            var = s2 * inv_n - mean * mean
            y = (y - mean) * jax.lax.rsqrt(var + LN_EPS)
            # gamma is zero-padded past the real width -> padded lanes stay 0.
            y = y * g_ref[pl.ds(ln_i, 1), :] + bt_ref[pl.ds(ln_i, 1), :]
        if relu:
            y = jnp.maximum(y, 0.0)
        return y

    x_ha, x_pt = xha_ref[...], xpt_ref[...]
    x_act, x_vel = act_ref[...], vel_ref[...]

    # HumanAvoidanceNetwork stand-in MLP: 20 -> 32 -> 32
    h = bias_ln_relu(dot(x_ha, W_HA1), B_HA1, 0, SHARED_LATENT_DIM)
    h = bias_ln_relu(dot(h, W_HA2), B_HA2, 1, SHARED_LATENT_DIM)
    # PT embedding MLP: 16 -> 32 -> 32
    p = bias_ln_relu(dot(x_pt, W_PT1), B_PT1, 2, SHARED_LATENT_DIM)
    p = bias_ln_relu(dot(p, W_PT2), B_PT2, 3, SHARED_LATENT_DIM)
    # fused_embedding: cat(HA, PT)=64 -> 64 -> 32  (concat -> split matmul)
    f = bias_ln_relu(dot(h, W_FU1_H) + dot(p, W_FU1_P), B_FU1, 4,
                     FUSING_LAYERS[0])
    f = bias_ln_relu(dot(f, W_FU2), B_FU2, 5, SIZE_OF_FUSED_LAYERS)
    # fused_embedding_with_action: cat(x, action)=34 -> 64 -> 32
    f = bias_ln_relu(dot(f, W_FA1_X) + dot(x_act, W_FA1_A), B_FA1, 6,
                     FUSING_LAYERS_WITH_ACTION[0])
    f = bias_ln_relu(dot(f, W_FA2), B_FA2, 7, SIZE_OF_FUSED_LAYERS)
    # extra_MLP: cat(x, past_vel)=40 -> 32 -> 32 -> 32 (last: no LN, no ReLU)
    f = bias_ln_relu(dot(f, W_EX1_X) + dot(x_vel, W_EX1_V), B_EX1, 8,
                     SIZE_OF_FUSED_LAYERS)
    f = bias_ln_relu(dot(f, W_EX2), B_EX2, 9, SIZE_OF_FUSED_LAYERS)
    f = dot(f, W_EX3) + b_ref[pl.ds(B_EX3, 1), :]
    o_ref[...] = f  # lane-dense (B, 128) store; real features in cols [0, 32)


# ---------------------------------------------------------------------------
# Parameter initialization (torch nn.Linear default init on real dims, then
# zero-padded / split / packed into lane-dense 128-wide slabs).
# ---------------------------------------------------------------------------
def _linear_init(key, din, dout):
    key, kw, kb = jax.random.split(key, 3)
    bound = 1.0 / float(din) ** 0.5
    w = jax.random.uniform(kw, (din, dout), minval=-bound, maxval=bound,
                           dtype=jnp.float32)
    b = jax.random.uniform(kb, (dout,), minval=-bound, maxval=bound,
                           dtype=jnp.float32)
    return key, w, b


def _pad_w(w):
    din, dout = w.shape
    return jnp.zeros((LANE, LANE), jnp.float32).at[:din, :dout].set(w)


def _pad_row(v):
    return jnp.zeros((LANE,), jnp.float32).at[:v.shape[0]].set(v)


def init_critic_params(key):
    # (din_real, dout_real, split_at (for concat-elimination), has_ln)
    layer_defs = [
        (HA_STATE_DIM, SHARED_LATENT_DIM, None, True),                        # HA1
        (SHARED_LATENT_DIM, SHARED_LATENT_DIM, None, True),                   # HA2
        (PT_INPUT_SIZE, SHARED_LATENT_DIM, None, True),                       # PT1
        (SHARED_LATENT_DIM, SHARED_LATENT_DIM, None, True),                   # PT2
        (2 * SHARED_LATENT_DIM + (1 if USE_TIME else 0), FUSING_LAYERS[0],
         SHARED_LATENT_DIM, True),                                            # FU1 (HA | PT)
        (FUSING_LAYERS[0], SIZE_OF_FUSED_LAYERS, None, True),                 # FU2
        (SIZE_OF_FUSED_LAYERS + ACTION_DIM, FUSING_LAYERS_WITH_ACTION[0],
         SIZE_OF_FUSED_LAYERS, True),                                         # FA1 (x | action)
        (FUSING_LAYERS_WITH_ACTION[0], SIZE_OF_FUSED_LAYERS, None, True),     # FA2
        (SIZE_OF_FUSED_LAYERS + LOOKBACK * 2, SIZE_OF_FUSED_LAYERS,
         SIZE_OF_FUSED_LAYERS, True),                                         # EX1 (x | vel)
        (SIZE_OF_FUSED_LAYERS, SIZE_OF_FUSED_LAYERS, None, True),             # EX2
        (SIZE_OF_FUSED_LAYERS, SIZE_OF_FUSED_LAYERS, None, False),            # EX3 (no LN/ReLU)
    ]
    w_slices, b_rows, g_rows, bt_rows = [], [], [], []
    for din, dout, split_at, has_ln in layer_defs:
        key, w, b = _linear_init(key, din, dout)
        if split_at is None:
            w_slices.append(_pad_w(w))
        else:
            w_slices.append(_pad_w(w[:split_at]))   # rows for the "x" operand
            w_slices.append(_pad_w(w[split_at:]))   # rows for the appended operand
        b_rows.append(_pad_row(b))
        if has_ln:
            g_rows.append(_pad_row(jnp.ones((dout,), jnp.float32)))   # zero-padded gamma
            bt_rows.append(_pad_row(jnp.zeros((dout,), jnp.float32)))
    assert len(w_slices) == N_W and len(b_rows) == N_B and len(g_rows) == N_LN
    return {
        "W": jnp.stack(w_slices).astype(jnp.bfloat16),  # (14,128,128) bf16
        "B": jnp.stack(b_rows),                         # (11,128) f32
        "G": jnp.stack(g_rows),                         # (10,128) f32
        "BT": jnp.stack(bt_rows),                       # (10,128) f32
    }


# ---------------------------------------------------------------------------
# Forward pass wrapper: pad inputs to 128 lanes, one pallas_call, slice output.
# ---------------------------------------------------------------------------
def _pad_lanes(x):
    b, d = x.shape
    x = x.astype(jnp.float32)
    if d == LANE:
        return x
    return jnp.pad(x, ((0, 0), (0, LANE - d)))


@jax.jit
def critic_forward(params, inputs_HA, inputs_PT, action):
    xha = _pad_lanes(inputs_HA["HA_state"])
    xpt = _pad_lanes(inputs_PT["PT_state"])
    xact = _pad_lanes(action)
    xvel = _pad_lanes(inputs_HA["past_robot_velocities"])
    batch = xha.shape[0]
    vmem_spec = pl.BlockSpec(memory_space=pltpu.MemorySpace.VMEM)
    out = pl.pallas_call(
        _critic_kernel,
        out_shape=jax.ShapeDtypeStruct((batch, LANE), jnp.float32),
        in_specs=[vmem_spec] * 8,
        out_specs=vmem_spec,
    )(xha, xpt, xact, xvel, params["W"], params["B"], params["G"], params["BT"])
    return out[:, :SIZE_OF_FUSED_LAYERS]  # == features_for_OOD


if __name__ == "__main__":
    key = jax.random.PRNGKey(0)
    params = init_critic_params(key)

    batch = 2
    k1, k2, k3, k4 = jax.random.split(jax.random.PRNGKey(0), 4)
    inputs_HA = {
        "HA_state": jax.random.normal(k1, (batch, HA_STATE_DIM), jnp.float32),
        "past_robot_velocities": jax.random.normal(
            k2, (batch, LOOKBACK * 2), jnp.float32),
    }
    inputs_PT = {
        "PT_state": jax.random.normal(k3, (batch, PT_INPUT_SIZE), jnp.float32),
    }
    action = jax.random.normal(k4, (batch, ACTION_DIM), jnp.float32)

    out = jax.block_until_ready(
        critic_forward(params, inputs_HA, inputs_PT, action))
    assert out.shape == (batch, SIZE_OF_FUSED_LAYERS), out.shape
    assert bool(jnp.all(jnp.isfinite(out)))
    print("KERNEL_OK")
</pallas_src>

<mosaic_0001>
module attributes {stable_mosaic.version = 11 : i64} {
  func.func @_critic_kernel(%arg0: memref<2x128xf32, #tpu.memory_space<vmem>>, %arg1: memref<2x128xf32, #tpu.memory_space<vmem>>, %arg2: memref<2x128xf32, #tpu.memory_space<vmem>>, %arg3: memref<2x128xf32, #tpu.memory_space<vmem>>, %arg4: memref<14x128x128xbf16, #tpu.memory_space<vmem>>, %arg5: memref<11x128xf32, #tpu.memory_space<vmem>>, %arg6: memref<10x128xf32, #tpu.memory_space<vmem>>, %arg7: memref<10x128xf32, #tpu.memory_space<vmem>>, %arg8: memref<2x128xf32, #tpu.memory_space<vmem>>) attributes {dimension_semantics = [], scalar_prefetch = 0 : i64, scratch_operands = 0 : i64, tpu.core_type = #tpu.core_type<tc>} {
    %c0 = arith.constant 0 : index
    %c0_0 = arith.constant 0 : index
    %0 = vector.load %arg0[%c0, %c0_0] : memref<2x128xf32, #tpu.memory_space<vmem>>, vector<2x128xf32>
    %c0_1 = arith.constant 0 : index
    %c0_2 = arith.constant 0 : index
    %1 = vector.load %arg1[%c0_1, %c0_2] : memref<2x128xf32, #tpu.memory_space<vmem>>, vector<2x128xf32>
    %c0_3 = arith.constant 0 : index
    %c0_4 = arith.constant 0 : index
    %2 = vector.load %arg2[%c0_3, %c0_4] : memref<2x128xf32, #tpu.memory_space<vmem>>, vector<2x128xf32>
    %c0_5 = arith.constant 0 : index
    %c0_6 = arith.constant 0 : index
    %3 = vector.load %arg3[%c0_5, %c0_6] : memref<2x128xf32, #tpu.memory_space<vmem>>, vector<2x128xf32>
    %4 = arith.truncf %0 : vector<2x128xf32> to vector<2x128xbf16>
    %c0_7 = arith.constant 0 : index
    %c0_8 = arith.constant 0 : index
    %c0_9 = arith.constant 0 : index
    %5 = vector.load %arg4[%c0_7, %c0_8, %c0_9] : memref<14x128x128xbf16, #tpu.memory_space<vmem>>, vector<1x128x128xbf16>
    %6 = vector.shape_cast %5 : vector<1x128x128xbf16> to vector<128x128xbf16>
    %cst = arith.constant dense<0.000000e+00> : vector<2x128xf32>
    %7 = tpu.matmul %4, %6, %cst {dimension_numbers = #tpu.dot_dimension_numbers<[1], [0], [0], [1], [0, 0, 1, 1], [], []>} : vector<2x128xbf16>, vector<128x128xbf16>, vector<2x128xf32> -> vector<2x128xf32>
    %c0_10 = arith.constant 0 : index
    %c0_11 = arith.constant 0 : index
    %8 = vector.load %arg5[%c0_10, %c0_11] : memref<11x128xf32, #tpu.memory_space<vmem>>, vector<1x128xf32>
    %9 = vector.broadcast %8 : vector<1x128xf32> to vector<2x128xf32>
    %10 = arith.addf %7, %9 : vector<2x128xf32>
    %cst_12 = arith.constant dense<0.000000e+00> : vector<2xf32>
    %11 = vector.multi_reduction <add>, %10, %cst_12 [1] : vector<2x128xf32> to vector<2xf32>
    %12 = vector.shape_cast %11 : vector<2xf32> to vector<2x1xf32>
    %13 = arith.mulf %10, %10 : vector<2x128xf32>
    %cst_13 = arith.constant dense<0.000000e+00> : vector<2xf32>
    %14 = vector.multi_reduction <add>, %13, %cst_13 [1] : vector<2x128xf32> to vector<2xf32>
    %15 = vector.shape_cast %14 : vector<2xf32> to vector<2x1xf32>
    %cst_14 = arith.constant 3.125000e-02 : f32
    %16 = vector.broadcast %cst_14 : f32 to vector<2x1xf32>
    %17 = arith.mulf %12, %16 : vector<2x1xf32>
    %cst_15 = arith.constant 3.125000e-02 : f32
    %18 = vector.broadcast %cst_15 : f32 to vector<2x1xf32>
    %19 = arith.mulf %15, %18 : vector<2x1xf32>
    %20 = arith.mulf %17, %17 : vector<2x1xf32>
    %21 = arith.subf %19, %20 : vector<2x1xf32>
    %22 = vector.broadcast %17 : vector<2x1xf32> to vector<2x128xf32>
    %23 = arith.subf %10, %22 : vector<2x128xf32>
    %cst_16 = arith.constant 9.99999974E-6 : f32
    %24 = vector.broadcast %cst_16 : f32 to vector<2x1xf32>
    %25 = arith.addf %21, %24 : vector<2x1xf32>
    %26 = math.rsqrt %25 : vector<2x1xf32>
    %27 = vector.broadcast %26 : vector<2x1xf32> to vector<2x128xf32>
    %28 = arith.mulf %23, %27 : vector<2x128xf32>
    %c0_17 = arith.constant 0 : index
    %c0_18 = arith.constant 0 : index
    %29 = vector.load %arg6[%c0_17, %c0_18] : memref<10x128xf32, #tpu.memory_space<vmem>>, vector<1x128xf32>
    %30 = vector.broadcast %29 : vector<1x128xf32> to vector<2x128xf32>
    %31 = arith.mulf %28, %30 : vector<2x128xf32>
    %c0_19 = arith.constant 0 : index
    %c0_20 = arith.constant 0 : index
    %32 = vector.load %arg7[%c0_19, %c0_20] : memref<10x128xf32, #tpu.memory_space<vmem>>, vector<1x128xf32>
    %33 = vector.broadcast %32 : vector<1x128xf32> to vector<2x128xf32>
    %34 = arith.addf %31, %33 : vector<2x128xf32>
    %cst_21 = arith.constant 0.000000e+00 : f32
    %35 = vector.broadcast %cst_21 : f32 to vector<2x128xf32>
    %36 = arith.maximumf %34, %35 : vector<2x128xf32>
    %37 = arith.truncf %36 : vector<2x128xf32> to vector<2x128xbf16>
    %c1 = arith.constant 1 : index
    %c0_22 = arith.constant 0 : index
    %c0_23 = arith.constant 0 : index
    %38 = vector.load %arg4[%c1, %c0_22, %c0_23] : memref<14x128x128xbf16, #tpu.memory_space<vmem>>, vector<1x128x128xbf16>
    %39 = vector.shape_cast %38 : vector<1x128x128xbf16> to vector<128x128xbf16>
    %cst_24 = arith.constant dense<0.000000e+00> : vector<2x128xf32>
    %40 = tpu.matmul %37, %39, %cst_24 {dimension_numbers = #tpu.dot_dimension_numbers<[1], [0], [0], [1], [0, 0, 1, 1], [], []>} : vector<2x128xbf16>, vector<128x128xbf16>, vector<2x128xf32> -> vector<2x128xf32>
    %c1_25 = arith.constant 1 : index
    %c0_26 = arith.constant 0 : index
    %41 = vector.load %arg5[%c1_25, %c0_26] : memref<11x128xf32, #tpu.memory_space<vmem>>, vector<1x128xf32>
    %42 = vector.broadcast %41 : vector<1x128xf32> to vector<2x128xf32>
    %43 = arith.addf %40, %42 : vector<2x128xf32>
    %cst_27 = arith.constant dense<0.000000e+00> : vector<2xf32>
    %44 = vector.multi_reduction <add>, %43, %cst_27 [1] : vector<2x128xf32> to vector<2xf32>
    %45 = vector.shape_cast %44 : vector<2xf32> to vector<2x1xf32>
    %46 = arith.mulf %43, %43 : vector<2x128xf32>
    %cst_28 = arith.constant dense<0.000000e+00> : vector<2xf32>
    %47 = vector.multi_reduction <add>, %46, %cst_28 [1] : vector<2x128xf32> to vector<2xf32>
    %48 = vector.shape_cast %47 : vector<2xf32> to vector<2x1xf32>
    %cst_29 = arith.constant 3.125000e-02 : f32
    %49 = vector.broadcast %cst_29 : f32 to vector<2x1xf32>
    %50 = arith.mulf %45, %49 : vector<2x1xf32>
    %cst_30 = arith.constant 3.125000e-02 : f32
    %51 = vector.broadcast %cst_30 : f32 to vector<2x1xf32>
    %52 = arith.mulf %48, %51 : vector<2x1xf32>
    %53 = arith.mulf %50, %50 : vector<2x1xf32>
    %54 = arith.subf %52, %53 : vector<2x1xf32>
    %55 = vector.broadcast %50 : vector<2x1xf32> to vector<2x128xf32>
    %56 = arith.subf %43, %55 : vector<2x128xf32>
    %cst_31 = arith.constant 9.99999974E-6 : f32
    %57 = vector.broadcast %cst_31 : f32 to vector<2x1xf32>
    %58 = arith.addf %54, %57 : vector<2x1xf32>
    %59 = math.rsqrt %58 : vector<2x1xf32>
    %60 = vector.broadcast %59 : vector<2x1xf32> to vector<2x128xf32>
    %61 = arith.mulf %56, %60 : vector<2x128xf32>
    %c1_32 = arith.constant 1 : index
    %c0_33 = arith.constant 0 : index
    %62 = vector.load %arg6[%c1_32, %c0_33] : memref<10x128xf32, #tpu.memory_space<vmem>>, vector<1x128xf32>
    %63 = vector.broadcast %62 : vector<1x128xf32> to vector<2x128xf32>
    %64 = arith.mulf %61, %63 : vector<2x128xf32>
    %c1_34 = arith.constant 1 : index
    %c0_35 = arith.constant 0 : index
    %65 = vector.load %arg7[%c1_34, %c0_35] : memref<10x128xf32, #tpu.memory_space<vmem>>, vector<1x128xf32>
    %66 = vector.broadcast %65 : vector<1x128xf32> to vector<2x128xf32>
    %67 = arith.addf %64, %66 : vector<2x128xf32>
    %cst_36 = arith.constant 0.000000e+00 : f32
    %68 = vector.broadcast %cst_36 : f32 to vector<2x128xf32>
    %69 = arith.maximumf %67, %68 : vector<2x128xf32>
    %70 = arith.truncf %1 : vector<2x128xf32> to vector<2x128xbf16>
    %c2 = arith.constant 2 : index
    %c0_37 = arith.constant 0 : index
    %c0_38 = arith.constant 0 : index
    %71 = vector.load %arg4[%c2, %c0_37, %c0_38] : memref<14x128x128xbf16, #tpu.memory_space<vmem>>, vector<1x128x128xbf16>
    %72 = vector.shape_cast %71 : vector<1x128x128xbf16> to vector<128x128xbf16>
    %cst_39 = arith.constant dense<0.000000e+00> : vector<2x128xf32>
    %73 = tpu.matmul %70, %72, %cst_39 {dimension_numbers = #tpu.dot_dimension_numbers<[1], [0], [0], [1], [0, 0, 1, 1], [], []>} : vector<2x128xbf16>, vector<128x128xbf16>, vector<2x128xf32> -> vector<2x128xf32>
    %c2_40 = arith.constant 2 : index
    %c0_41 = arith.constant 0 : index
    %74 = vector.load %arg5[%c2_40, %c0_41] : memref<11x128xf32, #tpu.memory_space<vmem>>, vector<1x128xf32>
    %75 = vector.broadcast %74 : vector<1x128xf32> to vector<2x128xf32>
    %76 = arith.addf %73, %75 : vector<2x128xf32>
    %cst_42 = arith.constant dense<0.000000e+00> : vector<2xf32>
    %77 = vector.multi_reduction <add>, %76, %cst_42 [1] : vector<2x128xf32> to vector<2xf32>
    %78 = vector.shape_cast %77 : vector<2xf32> to vector<2x1xf32>
    %79 = arith.mulf %76, %76 : vector<2x128xf32>
    %cst_43 = arith.constant dense<0.000000e+00> : vector<2xf32>
    %80 = vector.multi_reduction <add>, %79, %cst_43 [1] : vector<2x128xf32> to vector<2xf32>
    %81 = vector.shape_cast %80 : vector<2xf32> to vector<2x1xf32>
    %cst_44 = arith.constant 3.125000e-02 : f32
    %82 = vector.broadcast %cst_44 : f32 to vector<2x1xf32>
    %83 = arith.mulf %78, %82 : vector<2x1xf32>
    %cst_45 = arith.constant 3.125000e-02 : f32
    %84 = vector.broadcast %cst_45 : f32 to vector<2x1xf32>
    %85 = arith.mulf %81, %84 : vector<2x1xf32>
    %86 = arith.mulf %83, %83 : vector<2x1xf32>
    %87 = arith.subf %85, %86 : vector<2x1xf32>
    %88 = vector.broadcast %83 : vector<2x1xf32> to vector<2x128xf32>
    %89 = arith.subf %76, %88 : vector<2x128xf32>
    %cst_46 = arith.constant 9.99999974E-6 : f32
    %90 = vector.broadcast %cst_46 : f32 to vector<2x1xf32>
    %91 = arith.addf %87, %90 : vector<2x1xf32>
    %92 = math.rsqrt %91 : vector<2x1xf32>
    %93 = vector.broadcast %92 : vector<2x1xf32> to vector<2x128xf32>
    %94 = arith.mulf %89, %93 : vector<2x128xf32>
    %c2_47 = arith.constant 2 : index
    %c0_48 = arith.constant 0 : index
    %95 = vector.load %arg6[%c2_47, %c0_48] : memref<10x128xf32, #tpu.memory_space<vmem>>, vector<1x128xf32>
    %96 = vector.broadcast %95 : vector<1x128xf32> to vector<2x128xf32>
    %97 = arith.mulf %94, %96 : vector<2x128xf32>
    %c2_49 = arith.constant 2 : index
    %c0_50 = arith.constant 0 : index
    %98 = vector.load %arg7[%c2_49, %c0_50] : memref<10x128xf32, #tpu.memory_space<vmem>>, vector<1x128xf32>
    %99 = vector.broadcast %98 : vector<1x128xf32> to vector<2x128xf32>
    %100 = arith.addf %97, %99 : vector<2x128xf32>
    %cst_51 = arith.constant 0.000000e+00 : f32
    %101 = vector.broadcast %cst_51 : f32 to vector<2x128xf32>
    %102 = arith.maximumf %100, %101 : vector<2x128xf32>
    %103 = arith.truncf %102 : vector<2x128xf32> to vector<2x128xbf16>
    %c3 = arith.constant 3 : index
    %c0_52 = arith.constant 0 : index
    %c0_53 = arith.constant 0 : index
    %104 = vector.load %arg4[%c3, %c0_52, %c0_53] : memref<14x128x128xbf16, #tpu.memory_space<vmem>>, vector<1x128x128xbf16>
    %105 = vector.shape_cast %104 : vector<1x128x128xbf16> to vector<128x128xbf16>
    %cst_54 = arith.constant dense<0.000000e+00> : vector<2x128xf32>
    %106 = tpu.matmul %103, %105, %cst_54 {dimension_numbers = #tpu.dot_dimension_numbers<[1], [0], [0], [1], [0, 0, 1, 1], [], []>} : vector<2x128xbf16>, vector<128x128xbf16>, vector<2x128xf32> -> vector<2x128xf32>
    %c3_55 = arith.constant 3 : index
    %c0_56 = arith.constant 0 : index
    %107 = vector.load %arg5[%c3_55, %c0_56] : memref<11x128xf32, #tpu.memory_space<vmem>>, vector<1x128xf32>
    %108 = vector.broadcast %107 : vector<1x128xf32> to vector<2x128xf32>
    %109 = arith.addf %106, %108 : vector<2x128xf32>
    %cst_57 = arith.constant dense<0.000000e+00> : vector<2xf32>
    %110 = vector.multi_reduction <add>, %109, %cst_57 [1] : vector<2x128xf32> to vector<2xf32>
    %111 = vector.shape_cast %110 : vector<2xf32> to vector<2x1xf32>
    %112 = arith.mulf %109, %109 : vector<2x128xf32>
    %cst_58 = arith.constant dense<0.000000e+00> : vector<2xf32>
    %113 = vector.multi_reduction <add>, %112, %cst_58 [1] : vector<2x128xf32> to vector<2xf32>
    %114 = vector.shape_cast %113 : vector<2xf32> to vector<2x1xf32>
    %cst_59 = arith.constant 3.125000e-02 : f32
    %115 = vector.broadcast %cst_59 : f32 to vector<2x1xf32>
    %116 = arith.mulf %111, %115 : vector<2x1xf32>
    %cst_60 = arith.constant 3.125000e-02 : f32
    %117 = vector.broadcast %cst_60 : f32 to vector<2x1xf32>
    %118 = arith.mulf %114, %117 : vector<2x1xf32>
    %119 = arith.mulf %116, %116 : vector<2x1xf32>
    %120 = arith.subf %118, %119 : vector<2x1xf32>
    %121 = vector.broadcast %116 : vector<2x1xf32> to vector<2x128xf32>
    %122 = arith.subf %109, %121 : vector<2x128xf32>
    %cst_61 = arith.constant 9.99999974E-6 : f32
    %123 = vector.broadcast %cst_61 : f32 to vector<2x1xf32>
    %124 = arith.addf %120, %123 : vector<2x1xf32>
    %125 = math.rsqrt %124 : vector<2x1xf32>
    %126 = vector.broadcast %125 : vector<2x1xf32> to vector<2x128xf32>
    %127 = arith.mulf %122, %126 : vector<2x128xf32>
    %c3_62 = arith.constant 3 : index
    %c0_63 = arith.constant 0 : index
    %128 = vector.load %arg6[%c3_62, %c0_63] : memref<10x128xf32, #tpu.memory_space<vmem>>, vector<1x128xf32>
    %129 = vector.broadcast %128 : vector<1x128xf32> to vector<2x128xf32>
    %130 = arith.mulf %127, %129 : vector<2x128xf32>
    %c3_64 = arith.constant 3 : index
    %c0_65 = arith.constant 0 : index
    %131 = vector.load %arg7[%c3_64, %c0_65] : memref<10x128xf32, #tpu.memory_space<vmem>>, vector<1x128xf32>
    %132 = vector.broadcast %131 : vector<1x128xf32> to vector<2x128xf32>
    %133 = arith.addf %130, %132 : vector<2x128xf32>
    %cst_66 = arith.constant 0.000000e+00 : f32
    %134 = vector.broadcast %cst_66 : f32 to vector<2x128xf32>
    %135 = arith.maximumf %133, %134 : vector<2x128xf32>
    %136 = arith.truncf %69 : vector<2x128xf32> to vector<2x128xbf16>
    %c4 = arith.constant 4 : index
    %c0_67 = arith.constant 0 : index
    %c0_68 = arith.constant 0 : index
    %137 = vector.load %arg4[%c4, %c0_67, %c0_68] : memref<14x128x128xbf16, #tpu.memory_space<vmem>>, vector<1x128x128xbf16>
    %138 = vector.shape_cast %137 : vector<1x128x128xbf16> to vector<128x128xbf16>
    %cst_69 = arith.constant dense<0.000000e+00> : vector<2x128xf32>
    %139 = tpu.matmul %136, %138, %cst_69 {dimension_numbers = #tpu.dot_dimension_numbers<[1], [0], [0], [1], [0, 0, 1, 1], [], []>} : vector<2x128xbf16>, vector<128x128xbf16>, vector<2x128xf32> -> vector<2x128xf32>
    %140 = arith.truncf %135 : vector<2x128xf32> to vector<2x128xbf16>
    %c5 = arith.constant 5 : index
    %c0_70 = arith.constant 0 : index
    %c0_71 = arith.constant 0 : index
    %141 = vector.load %arg4[%c5, %c0_70, %c0_71] : memref<14x128x128xbf16, #tpu.memory_space<vmem>>, vector<1x128x128xbf16>
    %142 = vector.shape_cast %141 : vector<1x128x128xbf16> to vector<128x128xbf16>
    %cst_72 = arith.constant dense<0.000000e+00> : vector<2x128xf32>
    %143 = tpu.matmul %140, %142, %cst_72 {dimension_numbers = #tpu.dot_dimension_numbers<[1], [0], [0], [1], [0, 0, 1, 1], [], []>} : vector<2x128xbf16>, vector<128x128xbf16>, vector<2x128xf32> -> vector<2x128xf32>
    %144 = arith.addf %139, %143 : vector<2x128xf32>
    %c4_73 = arith.constant 4 : index
    %c0_74 = arith.constant 0 : index
    %145 = vector.load %arg5[%c4_73, %c0_74] : memref<11x128xf32, #tpu.memory_space<vmem>>, vector<1x128xf32>
    %146 = vector.broadcast %145 : vector<1x128xf32> to vector<2x128xf32>
    %147 = arith.addf %144, %146 : vector<2x128xf32>
    %cst_75 = arith.constant dense<0.000000e+00> : vector<2xf32>
    %148 = vector.multi_reduction <add>, %147, %cst_75 [1] : vector<2x128xf32> to vector<2xf32>
    %149 = vector.shape_cast %148 : vector<2xf32> to vector<2x1xf32>
    %150 = arith.mulf %147, %147 : vector<2x128xf32>
    %cst_76 = arith.constant dense<0.000000e+00> : vector<2xf32>
    %151 = vector.multi_reduction <add>, %150, %cst_76 [1] : vector<2x128xf32> to vector<2xf32>
    %152 = vector.shape_cast %151 : vector<2xf32> to vector<2x1xf32>
    %cst_77 = arith.constant 1.562500e-02 : f32
    %153 = vector.broadcast %cst_77 : f32 to vector<2x1xf32>
    %154 = arith.mulf %149, %153 : vector<2x1xf32>
    %cst_78 = arith.constant 1.562500e-02 : f32
    %155 = vector.broadcast %cst_78 : f32 to vector<2x1xf32>
    %156 = arith.mulf %152, %155 : vector<2x1xf32>
    %157 = arith.mulf %154, %154 : vector<2x1xf32>
    %158 = arith.subf %156, %157 : vector<2x1xf32>
    %159 = vector.broadcast %154 : vector<2x1xf32> to vector<2x128xf32>
    %160 = arith.subf %147, %159 : vector<2x128xf32>
    %cst_79 = arith.constant 9.99999974E-6 : f32
    %161 = vector.broadcast %cst_79 : f32 to vector<2x1xf32>
    %162 = arith.addf %158, %161 : vector<2x1xf32>
    %163 = math.rsqrt %162 : vector<2x1xf32>
    %164 = vector.broadcast %163 : vector<2x1xf32> to vector<2x128xf32>
    %165 = arith.mulf %160, %164 : vector<2x128xf32>
    %c4_80 = arith.constant 4 : index
    %c0_81 = arith.constant 0 : index
    %166 = vector.load %arg6[%c4_80, %c0_81] : memref<10x128xf32, #tpu.memory_space<vmem>>, vector<1x128xf32>
    %167 = vector.broadcast %166 : vector<1x128xf32> to vector<2x128xf32>
    %168 = arith.mulf %165, %167 : vector<2x128xf32>
    %c4_82 = arith.constant 4 : index
    %c0_83 = arith.constant 0 : index
    %169 = vector.load %arg7[%c4_82, %c0_83] : memref<10x128xf32, #tpu.memory_space<vmem>>, vector<1x128xf32>
    %170 = vector.broadcast %169 : vector<1x128xf32> to vector<2x128xf32>
    %171 = arith.addf %168, %170 : vector<2x128xf32>
    %cst_84 = arith.constant 0.000000e+00 : f32
    %172 = vector.broadcast %cst_84 : f32 to vector<2x128xf32>
    %173 = arith.maximumf %171, %172 : vector<2x128xf32>
    %174 = arith.truncf %173 : vector<2x128xf32> to vector<2x128xbf16>
    %c6 = arith.constant 6 : index
    %c0_85 = arith.constant 0 : index
    %c0_86 = arith.constant 0 : index
    %175 = vector.load %arg4[%c6, %c0_85, %c0_86] : memref<14x128x128xbf16, #tpu.memory_space<vmem>>, vector<1x128x128xbf16>
    %176 = vector.shape_cast %175 : vector<1x128x128xbf16> to vector<128x128xbf16>
    %cst_87 = arith.constant dense<0.000000e+00> : vector<2x128xf32>
    %177 = tpu.matmul %174, %176, %cst_87 {dimension_numbers = #tpu.dot_dimension_numbers<[1], [0], [0], [1], [0, 0, 1, 1], [], []>} : vector<2x128xbf16>, vector<128x128xbf16>, vector<2x128xf32> -> vector<2x128xf32>
    %c5_88 = arith.constant 5 : index
    %c0_89 = arith.constant 0 : index
    %178 = vector.load %arg5[%c5_88, %c0_89] : memref<11x128xf32, #tpu.memory_space<vmem>>, vector<1x128xf32>
    %179 = vector.broadcast %178 : vector<1x128xf32> to vector<2x128xf32>
    %180 = arith.addf %177, %179 : vector<2x128xf32>
    %cst_90 = arith.constant dense<0.000000e+00> : vector<2xf32>
    %181 = vector.multi_reduction <add>, %180, %cst_90 [1] : vector<2x128xf32> to vector<2xf32>
    %182 = vector.shape_cast %181 : vector<2xf32> to vector<2x1xf32>
    %183 = arith.mulf %180, %180 : vector<2x128xf32>
    %cst_91 = arith.constant dense<0.000000e+00> : vector<2xf32>
    %184 = vector.multi_reduction <add>, %183, %cst_91 [1] : vector<2x128xf32> to vector<2xf32>
    %185 = vector.shape_cast %184 : vector<2xf32> to vector<2x1xf32>
    %cst_92 = arith.constant 3.125000e-02 : f32
    %186 = vector.broadcast %cst_92 : f32 to vector<2x1xf32>
    %187 = arith.mulf %182, %186 : vector<2x1xf32>
    %cst_93 = arith.constant 3.125000e-02 : f32
    %188 = vector.broadcast %cst_93 : f32 to vector<2x1xf32>
    %189 = arith.mulf %185, %188 : vector<2x1xf32>
    %190 = arith.mulf %187, %187 : vector<2x1xf32>
    %191 = arith.subf %189, %190 : vector<2x1xf32>
    %192 = vector.broadcast %187 : vector<2x1xf32> to vector<2x128xf32>
    %193 = arith.subf %180, %192 : vector<2x128xf32>
    %cst_94 = arith.constant 9.99999974E-6 : f32
    %194 = vector.broadcast %cst_94 : f32 to vector<2x1xf32>
    %195 = arith.addf %191, %194 : vector<2x1xf32>
    %196 = math.rsqrt %195 : vector<2x1xf32>
    %197 = vector.broadcast %196 : vector<2x1xf32> to vector<2x128xf32>
    %198 = arith.mulf %193, %197 : vector<2x128xf32>
    %c5_95 = arith.constant 5 : index
    %c0_96 = arith.constant 0 : index
    %199 = vector.load %arg6[%c5_95, %c0_96] : memref<10x128xf32, #tpu.memory_space<vmem>>, vector<1x128xf32>
    %200 = vector.broadcast %199 : vector<1x128xf32> to vector<2x128xf32>
    %201 = arith.mulf %198, %200 : vector<2x128xf32>
    %c5_97 = arith.constant 5 : index
    %c0_98 = arith.constant 0 : index
    %202 = vector.load %arg7[%c5_97, %c0_98] : memref<10x128xf32, #tpu.memory_space<vmem>>, vector<1x128xf32>
    %203 = vector.broadcast %202 : vector<1x128xf32> to vector<2x128xf32>
    %204 = arith.addf %201, %203 : vector<2x128xf32>
    %cst_99 = arith.constant 0.000000e+00 : f32
    %205 = vector.broadcast %cst_99 : f32 to vector<2x128xf32>
    %206 = arith.maximumf %204, %205 : vector<2x128xf32>
    %207 = arith.truncf %206 : vector<2x128xf32> to vector<2x128xbf16>
    %c7 = arith.constant 7 : index
    %c0_100 = arith.constant 0 : index
    %c0_101 = arith.constant 0 : index
    %208 = vector.load %arg4[%c7, %c0_100, %c0_101] : memref<14x128x128xbf16, #tpu.memory_space<vmem>>, vector<1x128x128xbf16>
    %209 = vector.shape_cast %208 : vector<1x128x128xbf16> to vector<128x128xbf16>
    %cst_102 = arith.constant dense<0.000000e+00> : vector<2x128xf32>
    %210 = tpu.matmul %207, %209, %cst_102 {dimension_numbers = #tpu.dot_dimension_numbers<[1], [0], [0], [1], [0, 0, 1, 1], [], []>} : vector<2x128xbf16>, vector<128x128xbf16>, vector<2x128xf32> -> vector<2x128xf32>
    %211 = arith.truncf %2 : vector<2x128xf32> to vector<2x128xbf16>
    %c8 = arith.constant 8 : index
    %c0_103 = arith.constant 0 : index
    %c0_104 = arith.constant 0 : index
    %212 = vector.load %arg4[%c8, %c0_103, %c0_104] : memref<14x128x128xbf16, #tpu.memory_space<vmem>>, vector<1x128x128xbf16>
    %213 = vector.shape_cast %212 : vector<1x128x128xbf16> to vector<128x128xbf16>
    %cst_105 = arith.constant dense<0.000000e+00> : vector<2x128xf32>
    %214 = tpu.matmul %211, %213, %cst_105 {dimension_numbers = #tpu.dot_dimension_numbers<[1], [0], [0], [1], [0, 0, 1, 1], [], []>} : vector<2x128xbf16>, vector<128x128xbf16>, vector<2x128xf32> -> vector<2x128xf32>
    %215 = arith.addf %210, %214 : vector<2x128xf32>
    %c6_106 = arith.constant 6 : index
    %c0_107 = arith.constant 0 : index
    %216 = vector.load %arg5[%c6_106, %c0_107] : memref<11x128xf32, #tpu.memory_space<vmem>>, vector<1x128xf32>
    %217 = vector.broadcast %216 : vector<1x128xf32> to vector<2x128xf32>
    %218 = arith.addf %215, %217 : vector<2x128xf32>
    %cst_108 = arith.constant dense<0.000000e+00> : vector<2xf32>
    %219 = vector.multi_reduction <add>, %218, %cst_108 [1] : vector<2x128xf32> to vector<2xf32>
    %220 = vector.shape_cast %219 : vector<2xf32> to vector<2x1xf32>
    %221 = arith.mulf %218, %218 : vector<2x128xf32>
    %cst_109 = arith.constant dense<0.000000e+00> : vector<2xf32>
    %222 = vector.multi_reduction <add>, %221, %cst_109 [1] : vector<2x128xf32> to vector<2xf32>
    %223 = vector.shape_cast %222 : vector<2xf32> to vector<2x1xf32>
    %cst_110 = arith.constant 1.562500e-02 : f32
    %224 = vector.broadcast %cst_110 : f32 to vector<2x1xf32>
    %225 = arith.mulf %220, %224 : vector<2x1xf32>
    %cst_111 = arith.constant 1.562500e-02 : f32
    %226 = vector.broadcast %cst_111 : f32 to vector<2x1xf32>
    %227 = arith.mulf %223, %226 : vector<2x1xf32>
    %228 = arith.mulf %225, %225 : vector<2x1xf32>
    %229 = arith.subf %227, %228 : vector<2x1xf32>
    %230 = vector.broadcast %225 : vector<2x1xf32> to vector<2x128xf32>
    %231 = arith.subf %218, %230 : vector<2x128xf32>
    %cst_112 = arith.constant 9.99999974E-6 : f32
    %232 = vector.broadcast %cst_112 : f32 to vector<2x1xf32>
    %233 = arith.addf %229, %232 : vector<2x1xf32>
    %234 = math.rsqrt %233 : vector<2x1xf32>
    %235 = vector.broadcast %234 : vector<2x1xf32> to vector<2x128xf32>
    %236 = arith.mulf %231, %235 : vector<2x128xf32>
    %c6_113 = arith.constant 6 : index
    %c0_114 = arith.constant 0 : index
    %237 = vector.load %arg6[%c6_113, %c0_114] : memref<10x128xf32, #tpu.memory_space<vmem>>, vector<1x128xf32>
    %238 = vector.broadcast %237 : vector<1x128xf32> to vector<2x128xf32>
    %239 = arith.mulf %236, %238 : vector<2x128xf32>
    %c6_115 = arith.constant 6 : index
    %c0_116 = arith.constant 0 : index
    %240 = vector.load %arg7[%c6_115, %c0_116] : memref<10x128xf32, #tpu.memory_space<vmem>>, vector<1x128xf32>
    %241 = vector.broadcast %240 : vector<1x128xf32> to vector<2x128xf32>
    %242 = arith.addf %239, %241 : vector<2x128xf32>
    %cst_117 = arith.constant 0.000000e+00 : f32
    %243 = vector.broadcast %cst_117 : f32 to vector<2x128xf32>
    %244 = arith.maximumf %242, %243 : vector<2x128xf32>
    %245 = arith.truncf %244 : vector<2x128xf32> to vector<2x128xbf16>
    %c9 = arith.constant 9 : index
    %c0_118 = arith.constant 0 : index
    %c0_119 = arith.constant 0 : index
    %246 = vector.load %arg4[%c9, %c0_118, %c0_119] : memref<14x128x128xbf16, #tpu.memory_space<vmem>>, vector<1x128x128xbf16>
    %247 = vector.shape_cast %246 : vector<1x128x128xbf16> to vector<128x128xbf16>
    %cst_120 = arith.constant dense<0.000000e+00> : vector<2x128xf32>
    %248 = tpu.matmul %245, %247, %cst_120 {dimension_numbers = #tpu.dot_dimension_numbers<[1], [0], [0], [1], [0, 0, 1, 1], [], []>} : vector<2x128xbf16>, vector<128x128xbf16>, vector<2x128xf32> -> vector<2x128xf32>
    %c7_121 = arith.constant 7 : index
    %c0_122 = arith.constant 0 : index
    %249 = vector.load %arg5[%c7_121, %c0_122] : memref<11x128xf32, #tpu.memory_space<vmem>>, vector<1x128xf32>
    %250 = vector.broadcast %249 : vector<1x128xf32> to vector<2x128xf32>
    %251 = arith.addf %248, %250 : vector<2x128xf32>
    %cst_123 = arith.constant dense<0.000000e+00> : vector<2xf32>
    %252 = vector.multi_reduction <add>, %251, %cst_123 [1] : vector<2x128xf32> to vector<2xf32>
    %253 = vector.shape_cast %252 : vector<2xf32> to vector<2x1xf32>
    %254 = arith.mulf %251, %251 : vector<2x128xf32>
    %cst_124 = arith.constant dense<0.000000e+00> : vector<2xf32>
    %255 = vector.multi_reduction <add>, %254, %cst_124 [1] : vector<2x128xf32> to vector<2xf32>
    %256 = vector.shape_cast %255 : vector<2xf32> to vector<2x1xf32>
    %cst_125 = arith.constant 3.125000e-02 : f32
    %257 = vector.broadcast %cst_125 : f32 to vector<2x1xf32>
    %258 = arith.mulf %253, %257 : vector<2x1xf32>
    %cst_126 = arith.constant 3.125000e-02 : f32
    %259 = vector.broadcast %cst_126 : f32 to vector<2x1xf32>
    %260 = arith.mulf %256, %259 : vector<2x1xf32>
    %261 = arith.mulf %258, %258 : vector<2x1xf32>
    %262 = arith.subf %260, %261 : vector<2x1xf32>
    %263 = vector.broadcast %258 : vector<2x1xf32> to vector<2x128xf32>
    %264 = arith.subf %251, %263 : vector<2x128xf32>
    %cst_127 = arith.constant 9.99999974E-6 : f32
    %265 = vector.broadcast %cst_127 : f32 to vector<2x1xf32>
    %266 = arith.addf %262, %265 : vector<2x1xf32>
    %267 = math.rsqrt %266 : vector<2x1xf32>
    %268 = vector.broadcast %267 : vector<2x1xf32> to vector<2x128xf32>
    %269 = arith.mulf %264, %268 : vector<2x128xf32>
    %c7_128 = arith.constant 7 : index
    %c0_129 = arith.constant 0 : index
    %270 = vector.load %arg6[%c7_128, %c0_129] : memref<10x128xf32, #tpu.memory_space<vmem>>, vector<1x128xf32>
    %271 = vector.broadcast %270 : vector<1x128xf32> to vector<2x128xf32>
    %272 = arith.mulf %269, %271 : vector<2x128xf32>
    %c7_130 = arith.constant 7 : index
    %c0_131 = arith.constant 0 : index
    %273 = vector.load %arg7[%c7_130, %c0_131] : memref<10x128xf32, #tpu.memory_space<vmem>>, vector<1x128xf32>
    %274 = vector.broadcast %273 : vector<1x128xf32> to vector<2x128xf32>
    %275 = arith.addf %272, %274 : vector<2x128xf32>
    %cst_132 = arith.constant 0.000000e+00 : f32
    %276 = vector.broadcast %cst_132 : f32 to vector<2x128xf32>
    %277 = arith.maximumf %275, %276 : vector<2x128xf32>
    %278 = arith.truncf %277 : vector<2x128xf32> to vector<2x128xbf16>
    %c10 = arith.constant 10 : index
    %c0_133 = arith.constant 0 : index
    %c0_134 = arith.constant 0 : index
    %279 = vector.load %arg4[%c10, %c0_133, %c0_134] : memref<14x128x128xbf16, #tpu.memory_space<vmem>>, vector<1x128x128xbf16>
    %280 = vector.shape_cast %279 : vector<1x128x128xbf16> to vector<128x128xbf16>
    %cst_135 = arith.constant dense<0.000000e+00> : vector<2x128xf32>
    %281 = tpu.matmul %278, %280, %cst_135 {dimension_numbers = #tpu.dot_dimension_numbers<[1], [0], [0], [1], [0, 0, 1, 1], [], []>} : vector<2x128xbf16>, vector<128x128xbf16>, vector<2x128xf32> -> vector<2x128xf32>
    %282 = arith.truncf %3 : vector<2x128xf32> to vector<2x128xbf16>
    %c11 = arith.constant 11 : index
    %c0_136 = arith.constant 0 : index
    %c0_137 = arith.constant 0 : index
    %283 = vector.load %arg4[%c11, %c0_136, %c0_137] : memref<14x128x128xbf16, #tpu.memory_space<vmem>>, vector<1x128x128xbf16>
    %284 = vector.shape_cast %283 : vector<1x128x128xbf16> to vector<128x128xbf16>
    %cst_138 = arith.constant dense<0.000000e+00> : vector<2x128xf32>
    %285 = tpu.matmul %282, %284, %cst_138 {dimension_numbers = #tpu.dot_dimension_numbers<[1], [0], [0], [1], [0, 0, 1, 1], [], []>} : vector<2x128xbf16>, vector<128x128xbf16>, vector<2x128xf32> -> vector<2x128xf32>
    %286 = arith.addf %281, %285 : vector<2x128xf32>
    %c8_139 = arith.constant 8 : index
    %c0_140 = arith.constant 0 : index
    %287 = vector.load %arg5[%c8_139, %c0_140] : memref<11x128xf32, #tpu.memory_space<vmem>>, vector<1x128xf32>
    %288 = vector.broadcast %287 : vector<1x128xf32> to vector<2x128xf32>
    %289 = arith.addf %286, %288 : vector<2x128xf32>
    %cst_141 = arith.constant dense<0.000000e+00> : vector<2xf32>
    %290 = vector.multi_reduction <add>, %289, %cst_141 [1] : vector<2x128xf32> to vector<2xf32>
    %291 = vector.shape_cast %290 : vector<2xf32> to vector<2x1xf32>
    %292 = arith.mulf %289, %289 : vector<2x128xf32>
    %cst_142 = arith.constant dense<0.000000e+00> : vector<2xf32>
    %293 = vector.multi_reduction <add>, %292, %cst_142 [1] : vector<2x128xf32> to vector<2xf32>
    %294 = vector.shape_cast %293 : vector<2xf32> to vector<2x1xf32>
    %cst_143 = arith.constant 3.125000e-02 : f32
    %295 = vector.broadcast %cst_143 : f32 to vector<2x1xf32>
    %296 = arith.mulf %291, %295 : vector<2x1xf32>
    %cst_144 = arith.constant 3.125000e-02 : f32
    %297 = vector.broadcast %cst_144 : f32 to vector<2x1xf32>
    %298 = arith.mulf %294, %297 : vector<2x1xf32>
    %299 = arith.mulf %296, %296 : vector<2x1xf32>
    %300 = arith.subf %298, %299 : vector<2x1xf32>
    %301 = vector.broadcast %296 : vector<2x1xf32> to vector<2x128xf32>
    %302 = arith.subf %289, %301 : vector<2x128xf32>
    %cst_145 = arith.constant 9.99999974E-6 : f32
    %303 = vector.broadcast %cst_145 : f32 to vector<2x1xf32>
    %304 = arith.addf %300, %303 : vector<2x1xf32>
    %305 = math.rsqrt %304 : vector<2x1xf32>
    %306 = vector.broadcast %305 : vector<2x1xf32> to vector<2x128xf32>
    %307 = arith.mulf %302, %306 : vector<2x128xf32>
    %c8_146 = arith.constant 8 : index
    %c0_147 = arith.constant 0 : index
    %308 = vector.load %arg6[%c8_146, %c0_147] : memref<10x128xf32, #tpu.memory_space<vmem>>, vector<1x128xf32>
    %309 = vector.broadcast %308 : vector<1x128xf32> to vector<2x128xf32>
    %310 = arith.mulf %307, %309 : vector<2x128xf32>
    %c8_148 = arith.constant 8 : index
    %c0_149 = arith.constant 0 : index
    %311 = vector.load %arg7[%c8_148, %c0_149] : memref<10x128xf32, #tpu.memory_space<vmem>>, vector<1x128xf32>
    %312 = vector.broadcast %311 : vector<1x128xf32> to vector<2x128xf32>
    %313 = arith.addf %310, %312 : vector<2x128xf32>
    %cst_150 = arith.constant 0.000000e+00 : f32
    %314 = vector.broadcast %cst_150 : f32 to vector<2x128xf32>
    %315 = arith.maximumf %313, %314 : vector<2x128xf32>
    %316 = arith.truncf %315 : vector<2x128xf32> to vector<2x128xbf16>
    %c12 = arith.constant 12 : index
    %c0_151 = arith.constant 0 : index
    %c0_152 = arith.constant 0 : index
    %317 = vector.load %arg4[%c12, %c0_151, %c0_152] : memref<14x128x128xbf16, #tpu.memory_space<vmem>>, vector<1x128x128xbf16>
    %318 = vector.shape_cast %317 : vector<1x128x128xbf16> to vector<128x128xbf16>
    %cst_153 = arith.constant dense<0.000000e+00> : vector<2x128xf32>
    %319 = tpu.matmul %316, %318, %cst_153 {dimension_numbers = #tpu.dot_dimension_numbers<[1], [0], [0], [1], [0, 0, 1, 1], [], []>} : vector<2x128xbf16>, vector<128x128xbf16>, vector<2x128xf32> -> vector<2x128xf32>
    %c9_154 = arith.constant 9 : index
    %c0_155 = arith.constant 0 : index
    %320 = vector.load %arg5[%c9_154, %c0_155] : memref<11x128xf32, #tpu.memory_space<vmem>>, vector<1x128xf32>
    %321 = vector.broadcast %320 : vector<1x128xf32> to vector<2x128xf32>
    %322 = arith.addf %319, %321 : vector<2x128xf32>
    %cst_156 = arith.constant dense<0.000000e+00> : vector<2xf32>
    %323 = vector.multi_reduction <add>, %322, %cst_156 [1] : vector<2x128xf32> to vector<2xf32>
    %324 = vector.shape_cast %323 : vector<2xf32> to vector<2x1xf32>
    %325 = arith.mulf %322, %322 : vector<2x128xf32>
    %cst_157 = arith.constant dense<0.000000e+00> : vector<2xf32>
    %326 = vector.multi_reduction <add>, %325, %cst_157 [1] : vector<2x128xf32> to vector<2xf32>
    %327 = vector.shape_cast %326 : vector<2xf32> to vector<2x1xf32>
    %cst_158 = arith.constant 3.125000e-02 : f32
    %328 = vector.broadcast %cst_158 : f32 to vector<2x1xf32>
    %329 = arith.mulf %324, %328 : vector<2x1xf32>
    %cst_159 = arith.constant 3.125000e-02 : f32
    %330 = vector.broadcast %cst_159 : f32 to vector<2x1xf32>
    %331 = arith.mulf %327, %330 : vector<2x1xf32>
    %332 = arith.mulf %329, %329 : vector<2x1xf32>
    %333 = arith.subf %331, %332 : vector<2x1xf32>
    %334 = vector.broadcast %329 : vector<2x1xf32> to vector<2x128xf32>
    %335 = arith.subf %322, %334 : vector<2x128xf32>
    %cst_160 = arith.constant 9.99999974E-6 : f32
    %336 = vector.broadcast %cst_160 : f32 to vector<2x1xf32>
    %337 = arith.addf %333, %336 : vector<2x1xf32>
    %338 = math.rsqrt %337 : vector<2x1xf32>
    %339 = vector.broadcast %338 : vector<2x1xf32> to vector<2x128xf32>
    %340 = arith.mulf %335, %339 : vector<2x128xf32>
    %c9_161 = arith.constant 9 : index
    %c0_162 = arith.constant 0 : index
    %341 = vector.load %arg6[%c9_161, %c0_162] : memref<10x128xf32, #tpu.memory_space<vmem>>, vector<1x128xf32>
    %342 = vector.broadcast %341 : vector<1x128xf32> to vector<2x128xf32>
    %343 = arith.mulf %340, %342 : vector<2x128xf32>
    %c9_163 = arith.constant 9 : index
    %c0_164 = arith.constant 0 : index
    %344 = vector.load %arg7[%c9_163, %c0_164] : memref<10x128xf32, #tpu.memory_space<vmem>>, vector<1x128xf32>
    %345 = vector.broadcast %344 : vector<1x128xf32> to vector<2x128xf32>
    %346 = arith.addf %343, %345 : vector<2x128xf32>
    %cst_165 = arith.constant 0.000000e+00 : f32
    %347 = vector.broadcast %cst_165 : f32 to vector<2x128xf32>
    %348 = arith.maximumf %346, %347 : vector<2x128xf32>
    %349 = arith.truncf %348 : vector<2x128xf32> to vector<2x128xbf16>
    %c13 = arith.constant 13 : index
    %c0_166 = arith.constant 0 : index
    %c0_167 = arith.constant 0 : index
    %350 = vector.load %arg4[%c13, %c0_166, %c0_167] : memref<14x128x128xbf16, #tpu.memory_space<vmem>>, vector<1x128x128xbf16>
    %351 = vector.shape_cast %350 : vector<1x128x128xbf16> to vector<128x128xbf16>
    %cst_168 = arith.constant dense<0.000000e+00> : vector<2x128xf32>
    %352 = tpu.matmul %349, %351, %cst_168 {dimension_numbers = #tpu.dot_dimension_numbers<[1], [0], [0], [1], [0, 0, 1, 1], [], []>} : vector<2x128xbf16>, vector<128x128xbf16>, vector<2x128xf32> -> vector<2x128xf32>
    %c10_169 = arith.constant 10 : index
    %c0_170 = arith.constant 0 : index
    %353 = vector.load %arg5[%c10_169, %c0_170] : memref<11x128xf32, #tpu.memory_space<vmem>>, vector<1x128xf32>
    %354 = vector.broadcast %353 : vector<1x128xf32> to vector<2x128xf32>
    %355 = arith.addf %352, %354 : vector<2x128xf32>
    %c0_171 = arith.constant 0 : index
    %c0_172 = arith.constant 0 : index
    %356 = vector.load %arg8[%c0_171, %c0_172] : memref<2x128xf32, #tpu.memory_space<vmem>>, vector<2x128xf32>
    tpu.vector_store %arg8[%c0_171, %c0_172], %355 {strides = array<i32>} : memref<2x128xf32, #tpu.memory_space<vmem>>, vector<2x128xf32>,
    return
  }
}

</mosaic_0001>

<llo_original>
// kernel: critic_forward.1
$region0: #{critic_forward.1}
  #allocation0 [shape = 'u32[]', space=smem, size = 0x4, offset = 0x4, fixed_abs, tag = 'smem constant byte address 0x4 - core index']
  #allocation1 [shape = 'u32[144,128]{1,0:T(1,128)}', space=vmem, size = 0x12000, scoped, tag = 'internal scratch']
  %s0 = inlined_call_operand.vmem [shape: f32[2,128], index: 0, kind: input, shape index: {}]
  %s1 = inlined_call_operand.vmem [shape: f32[2,128], index: 1, kind: input, shape index: {}]
  %s2 = inlined_call_operand.vmem [shape: f32[2,128], index: 2, kind: input, shape index: {}]
  %s3 = inlined_call_operand.vmem [shape: f32[2,128], index: 3, kind: input, shape index: {}]
  %s4 = inlined_call_operand.hbm [shape: bf16[14,128,128], index: 4, kind: input, shape index: {}]
  %s5 = inlined_call_operand.vmem [shape: f32[11,128], index: 5, kind: input, shape index: {}]
  %s6 = inlined_call_operand.hbm [shape: f32[10,128], index: 6, kind: input, shape index: {}]
  %s7 = inlined_call_operand.hbm [shape: f32[10,128], index: 7, kind: input, shape index: {}]
  %s8 = inlined_call_operand.hbm [shape: f32[2,128], index: 8, kind: output, shape index: {}]
  %s9 = sld [smem:[#allocation0]]
  $region54: #{critic_forward.1} parent=0
    _
  %s11 = ssub.s32 1, %s9
  %s12 = scalar_select 0, %s11, %s9
  $region1: #{critic_forward.1} parent=0
    #allocation2 [shape = 'u8[458752]{0}', space=vmem, size = 0x70000, scoped, tag = 'input window, operand 4, single buffered']
    #allocation3 [shape = 's32[1]{0}', space=sflag, size = 0x4, scoped, tag = 'scoped memory for critic_forward.1']
    #allocation4 [shape = 's32[1]{0}', space=sflag, size = 0x4, scoped, tag = 'scoped memory for critic_forward.1']
    #allocation5 [shape = 'u8[8192]{0}', space=vmem, size = 0x2000, scoped, tag = 'input window, operand 6, single buffered']
    #allocation6 [shape = 's32[1]{0}', space=sflag, size = 0x4, scoped, tag = 'scoped memory for critic_forward.1']
    #allocation7 [shape = 'u8[8192]{0}', space=vmem, size = 0x2000, scoped, tag = 'input window, operand 7, single buffered']
    #allocation8 [shape = 'u8[1024]{0}', space=vmem, size = 0x400, scoped, tag = 'output window, operand 0, single buffered']
    %13 = vsyncpa [#allocation3], 0
    %14 = vsyncpa [#allocation6], 0
    %15 = vsyncpa [#allocation4], 0
    // Predicated region
    $region2: #{critic_forward.1} parent=1 // pred_check
      _
    $region3: #{critic_forward.1} parent=1 // pred_check_branch
      %17 = sbr.rel (0) target = $region5
    $region4: #{critic_forward.1} parent=1 // pred_region
      _
    $region5: #{critic_forward.1} parent=1 // pred_fallthru
      _
    // Predicated region
    $region6: #{critic_forward.1} parent=1 // pred_check
      _
    $region7: #{critic_forward.1} parent=1 // pred_check_branch
      %19 = sbr.rel (0) target = $region9
    $region8: #{critic_forward.1} parent=1 // pred_region
      _
    $region9: #{critic_forward.1} parent=1 // pred_fallthru
      _
    // Predicated region
    $region10: #{critic_forward.1} parent=1 // pred_check
      _
    $region11: #{critic_forward.1} parent=1 // pred_check_branch
      %21 = sbr.rel (0) target = $region13
    $region12: #{critic_forward.1} parent=1 // pred_region
      _
    $region13: #{critic_forward.1} parent=1 // pred_fallthru
      _
    // Predicated region
    $region14: #{critic_forward.1} parent=1 // pred_check
      _
    $region15: #{critic_forward.1} parent=1 // pred_check_branch
      %23 = sbr.rel (0) target = $region17
    $region16: #{critic_forward.1} parent=1 // pred_region
      _
    $region17: #{critic_forward.1} parent=1 // pred_fallthru
      _
    // Predicated region
    $region18: #{critic_forward.1} parent=1 // pred_check
      _
    $region19: #{critic_forward.1} parent=1 // pred_check_branch
      %25 = sbr.rel (0) target = $region21
    $region20: #{critic_forward.1} parent=1 // pred_region
      %s27 = ssub.s32 14336, 14336
      %28 = vsyncadd [#allocation3], %s27
      %s29 = sshll.u32 [#allocation2], 4
      %s30 = int_to_ptr.vmem [resolvable:$true] %s29
      %35 = dma.hbm_to_vmem [thread:$0]  %s4, 14336, %s30, [#allocation3], 64, 64, 4
    $region21: #{critic_forward.1} parent=1 // pred_fallthru
      _
    // Predicated region
    $region22: #{critic_forward.1} parent=1 // pred_check
      _
    $region23: #{critic_forward.1} parent=1 // pred_check_branch
      %37 = sbr.rel (0) target = $region25
    $region24: #{critic_forward.1} parent=1 // pred_region
      _
    $region25: #{critic_forward.1} parent=1 // pred_fallthru
      _
    // Predicated region
    $region26: #{critic_forward.1} parent=1 // pred_check
      _
    $region27: #{critic_forward.1} parent=1 // pred_check_branch
      %39 = sbr.rel (0) target = $region29
    $region28: #{critic_forward.1} parent=1 // pred_region
      %s41 = ssub.s32 256, 256
      %42 = vsyncadd [#allocation6], %s41
      %s43 = sshll.u32 [#allocation5], 4
      %s44 = int_to_ptr.vmem [resolvable:$true] %s43
      %49 = dma.hbm_to_vmem [thread:$0]  %s6, 256, %s44, [#allocation6], 128, 128, 8
    $region29: #{critic_forward.1} parent=1 // pred_fallthru
      _
    // Predicated region
    $region30: #{critic_forward.1} parent=1 // pred_check
      _
    $region31: #{critic_forward.1} parent=1 // pred_check_branch
      %51 = sbr.rel (0) target = $region33
    $region32: #{critic_forward.1} parent=1 // pred_region
      %s53 = ssub.s32 256, 256
      %54 = vsyncadd [#allocation6], %s53
      %s55 = sshll.u32 [#allocation7], 4
      %s56 = int_to_ptr.vmem [resolvable:$true] %s55
      %61 = dma.hbm_to_vmem [thread:$0]  %s7, 256, %s56, [#allocation6], 128, 128, 8
    $region33: #{critic_forward.1} parent=1 // pred_fallthru
      _
    // Predicated region
    $region34: #{critic_forward.1} parent=1 // pred_check
      _
    $region35: #{critic_forward.1} parent=1 // pred_check_branch
      %63 = sbr.rel (0) target = $region37
    $region36: #{critic_forward.1} parent=1 // pred_region
      %64 = dma.done [#allocation3], 14336
    $region37: #{critic_forward.1} parent=1 // pred_fallthru
      _
    // Predicated region
    $region38: #{critic_forward.1} parent=1 // pred_check
      _
    $region39: #{critic_forward.1} parent=1 // pred_check_branch
      %66 = sbr.rel (0) target = $region41
    $region40: #{critic_forward.1} parent=1 // pred_region
      %67 = dma.done [#allocation6], 256
    $region41: #{critic_forward.1} parent=1 // pred_fallthru
      _
    // Predicated region
    $region42: #{critic_forward.1} parent=1 // pred_check
      _
    $region43: #{critic_forward.1} parent=1 // pred_check_branch
      %69 = sbr.rel (0) target = $region45
    $region44: #{critic_forward.1} parent=1 // pred_region
      %70 = dma.done [#allocation6], 256
    $region45: #{critic_forward.1} parent=1 // pred_fallthru
      _
    %v72 = vld [vmem:[%s0] sm:$0x3]
    %v73 = vld [vmem:[%s1] sm:$0x3]
    %v74 = vld [vmem:[%s2] sm:$0x3]
    %v75 = vld [vmem:[%s3] sm:$0x3]
    %v76 = vpack.c.bf16 %v72, %v72
    %v77 = vld [vmem:[#allocation2] sm:$0xf]
    %v78 = vld [vmem:[#allocation2 + $0x4] sm:$0xf]
    %v79 = vld [vmem:[#allocation2 + $0x8] sm:$0xf]
    %v80 = vld [vmem:[#allocation2 + $0xc] sm:$0xf]
    %v81 = vld [vmem:[#allocation2 + $0x10] sm:$0xf]
    %v82 = vld [vmem:[#allocation2 + $0x14] sm:$0xf]
    %v83 = vld [vmem:[#allocation2 + $0x18] sm:$0xf]
    %v84 = vld [vmem:[#allocation2 + $0x1c] sm:$0xf]
    %v85 = vld [vmem:[#allocation2 + $0x20] sm:$0xf]
    %v86 = vld [vmem:[#allocation2 + $0x24] sm:$0xf]
    %v87 = vld [vmem:[#allocation2 + $0x28] sm:$0xf]
    %v88 = vld [vmem:[#allocation2 + $0x2c] sm:$0xf]
    %v89 = vld [vmem:[#allocation2 + $0x30] sm:$0xf]
    %v90 = vld [vmem:[#allocation2 + $0x34] sm:$0xf]
    %v91 = vld [vmem:[#allocation2 + $0x38] sm:$0xf]
    %v92 = vld [vmem:[#allocation2 + $0x3c] sm:$0xf]
    %v93 = vld [vmem:[%s5] sm:$0x1]
    %v94 = vlaneseq
    %v95 = vshrl.u32 %v94, 7
    %v96 = vsub.s32 0, %v95
    %v97 = vrot.slane %v93, %v96
    %v114 = vunpack.c.l.b16 %v77
    %v115 = vunpack.c.l.b16 %v78
    %v116 = vunpack.c.l.b16 %v79
    %v117 = vunpack.c.l.b16 %v80
    %v118 = vunpack.c.l.b16 %v81
    %v119 = vunpack.c.l.b16 %v82
    %v120 = vunpack.c.l.b16 %v83
    %v121 = vunpack.c.l.b16 %v84
    %v122 = vunpack.c.l.b16 %v85
    %v123 = vunpack.c.l.b16 %v86
    %v124 = vunpack.c.l.b16 %v87
    %v125 = vunpack.c.l.b16 %v88
    %v126 = vunpack.c.l.b16 %v89
    %v127 = vunpack.c.l.b16 %v90
    %v128 = vunpack.c.l.b16 %v91
    %v129 = vunpack.c.l.b16 %v92
    %v130 = vpack.c.b16 %v115, %v114
    %v131 = vpack.c.b16 %v117, %v116
    %v132 = vpack.c.b16 %v119, %v118
    %v133 = vpack.c.b16 %v121, %v120
    %v134 = vpack.c.b16 %v123, %v122
    %v135 = vpack.c.b16 %v125, %v124
    %v136 = vpack.c.b16 %v127, %v126
    %v137 = vpack.c.b16 %v129, %v128
    %146 = vmatprep.subr.bf16.mxu0 0
    %147 = vmatpush1.bf16.msra.mxu0 %v137
    %148 = vmatprep.subr.bf16.mxu0 0
    %149 = vmatpush1.bf16.msra.mxu0 %v136
    %150 = vmatprep.subr.bf16.mxu0 0
    %151 = vmatpush1.bf16.msra.mxu0 %v135
    %152 = vmatprep.subr.bf16.mxu0 0
    %153 = vmatpush1.bf16.msra.mxu0 %v134
    %154 = vmatprep.subr.bf16.mxu0 0
    %155 = vmatpush1.bf16.msra.mxu0 %v133
    %156 = vmatprep.subr.bf16.mxu0 0
    %157 = vmatpush1.bf16.msra.mxu0 %v132
    %158 = vmatprep.subr.bf16.mxu0 0
    %159 = vmatpush1.bf16.msra.mxu0 %v131
    %160 = vmatprep.subr.bf16.mxu0 0
    %161 = vmatpush1.bf16.msra.mxu0 %v130
    %162 = vmatprep.subr.bf16.mxu0 0
    %163 = vmatpush2.bf16.msra.mxu0 0
    %164 = vmatprep.subr.bf16.mxu0 0
    %165 = vmatpush2.bf16.msra.mxu0 0
    %166 = vmatprep.subr.bf16.mxu0 0
    %167 = vmatpush2.bf16.msra.mxu0 0
    %168 = vmatprep.subr.bf16.mxu0 0
    %169 = vmatpush2.bf16.msra.mxu0 0
    %170 = vmatprep.subr.bf16.mxu0 0
    %171 = vmatpush2.bf16.msra.mxu0 0
    %172 = vmatprep.subr.bf16.mxu0 0
    %173 = vmatpush2.bf16.msra.mxu0 0
    %174 = vmatprep.subr.bf16.mxu0 0
    %175 = vmatpush2.bf16.msra.mxu0 0
    %176 = vmatprep.subr.bf16.mxu0 0
    %177 = vmatpush2.bf16.msra.mxu0 0
    %178 = vmatprep.mubr.bf16.mxu0 0
    %179 = vmatmul.mubr.bf16.gmra.mxu0 %v76
    %v180 = vpop.f32.mrf.mxu0
    %v181 = vadd.f32 %v97, %v180
    %v182 = vpop.f32.mrf.mxu0
    %v183 = vpop.f32.mrf.mxu0
    %v184 = vpop.f32.mrf.mxu0
    %185 = vdwg.mxu0
    %vm186 = vcmask 1041408
    %v187 = vsel %vm186, %v181, 0.0
    %188 = vadd.xlane.f32.xlu0 %v187
    %v189 = vpop.xlane.xlu0 %188
    %v190 = vmul.f32 %v181, %v181
    %v191 = vsel %vm186, %v190, 0.0
    %192 = vadd.xlane.f32.xlu0 %v191
    %v193 = vpop.xlane.xlu0 %192
    %v194 = vmul.f32 %v189, 0.03125
    %v195 = vmul.f32 %v193, 0.03125
    %v196 = vmul.f32 %v194, %v194
    %v197 = vsub.f32 %v195, %v196
    %v198 = vsub.f32 %v181, %v194
    %v199 = vadd.f32 %v197, 1e-05
    %v200 = vrsqrt.pop %v199
    %v201 = vmul.f32 %v198, %v200
    %v202 = vld [vmem:[#allocation5] sm:$0x1]
    %v203 = vlaneseq
    %v204 = vshrl.u32 %v203, 7
    %v205 = vsub.s32 0, %v204
    %v206 = vrot.slane %v202, %v205
    %v207 = vmul.f32 %v201, %v206
    %v208 = vld [vmem:[#allocation7] sm:$0x1]
    %v209 = vlaneseq
    %v210 = vshrl.u32 %v209, 7
    %v211 = vsub.s32 0, %v210
    %v212 = vrot.slane %v208, %v211
    %v213 = vadd.f32 %v207, %v212
    %v214 = vmax.f32 %v213, 0.0
    %v215 = vpack.c.bf16 %v214, %v214
    %s216 = scalar_lea.vmem [#allocation2], 64
    %v217 = vld [vmem:[%s216] sm:$0xf]
    %v218 = vld [vmem:[%s216 + $0x4] sm:$0xf]
    %v219 = vld [vmem:[%s216 + $0x8] sm:$0xf]
    %v220 = vld [vmem:[%s216 + $0xc] sm:$0xf]
    %v221 = vld [vmem:[%s216 + $0x10] sm:$0xf]
    %v222 = vld [vmem:[%s216 + $0x14] sm:$0xf]
    %v223 = vld [vmem:[%s216 + $0x18] sm:$0xf]
    %v224 = vld [vmem:[%s216 + $0x1c] sm:$0xf]
    %v225 = vld [vmem:[%s216 + $0x20] sm:$0xf]
    %v226 = vld [vmem:[%s216 + $0x24] sm:$0xf]
    %v227 = vld [vmem:[%s216 + $0x28] sm:$0xf]
    %v228 = vld [vmem:[%s216 + $0x2c] sm:$0xf]
    %v229 = vld [vmem:[%s216 + $0x30] sm:$0xf]
    %v230 = vld [vmem:[%s216 + $0x34] sm:$0xf]
    %v231 = vld [vmem:[%s216 + $0x38] sm:$0xf]
    %v232 = vld [vmem:[%s216 + $0x3c] sm:$0xf]
    %v233 = vld [vmem:[%s5 + $0x1] sm:$0x1]
    %v234 = vlaneseq
    %v235 = vshrl.u32 %v234, 7
    %v236 = vsub.s32 0, %v235
    %v237 = vrot.slane %v233, %v236
    %v254 = vunpack.c.l.b16 %v217
    %v255 = vunpack.c.l.b16 %v218
    %v256 = vunpack.c.l.b16 %v219
    %v257 = vunpack.c.l.b16 %v220
    %v258 = vunpack.c.l.b16 %v221
    %v259 = vunpack.c.l.b16 %v222
    %v260 = vunpack.c.l.b16 %v223
    %v261 = vunpack.c.l.b16 %v224
    %v262 = vunpack.c.l.b16 %v225
    %v263 = vunpack.c.l.b16 %v226
    %v264 = vunpack.c.l.b16 %v227
    %v265 = vunpack.c.l.b16 %v228
    %v266 = vunpack.c.l.b16 %v229
    %v267 = vunpack.c.l.b16 %v230
    %v268 = vunpack.c.l.b16 %v231
    %v269 = vunpack.c.l.b16 %v232
    %v270 = vpack.c.b16 %v255, %v254
    %v271 = vpack.c.b16 %v257, %v256
    %v272 = vpack.c.b16 %v259, %v258
    %v273 = vpack.c.b16 %v261, %v260
    %v274 = vpack.c.b16 %v263, %v262
    %v275 = vpack.c.b16 %v265, %v264
    %v276 = vpack.c.b16 %v267, %v266
    %v277 = vpack.c.b16 %v269, %v268
    %286 = vmatprep.subr.bf16.mxu0 0
    %287 = vmatpush1.bf16.msra.mxu0 %v277
    %288 = vmatprep.subr.bf16.mxu0 0
    %289 = vmatpush1.bf16.msra.mxu0 %v276
    %290 = vmatprep.subr.bf16.mxu0 0
    %291 = vmatpush1.bf16.msra.mxu0 %v275
    %292 = vmatprep.subr.bf16.mxu0 0
    %293 = vmatpush1.bf16.msra.mxu0 %v274
    %294 = vmatprep.subr.bf16.mxu0 0
    %295 = vmatpush1.bf16.msra.mxu0 %v273
    %296 = vmatprep.subr.bf16.mxu0 0
    %297 = vmatpush1.bf16.msra.mxu0 %v272
    %298 = vmatprep.subr.bf16.mxu0 0
    %299 = vmatpush1.bf16.msra.mxu0 %v271
    %300 = vmatprep.subr.bf16.mxu0 0
    %301 = vmatpush1.bf16.msra.mxu0 %v270
    %302 = vmatprep.subr.bf16.mxu0 0
    %303 = vmatpush2.bf16.msra.mxu0 0
    %304 = vmatprep.subr.bf16.mxu0 0
    %305 = vmatpush2.bf16.msra.mxu0 0
    %306 = vmatprep.subr.bf16.mxu0 0
    %307 = vmatpush2.bf16.msra.mxu0 0
    %308 = vmatprep.subr.bf16.mxu0 0
    %309 = vmatpush2.bf16.msra.mxu0 0
    %310 = vmatprep.subr.bf16.mxu0 0
    %311 = vmatpush2.bf16.msra.mxu0 0
    %312 = vmatprep.subr.bf16.mxu0 0
    %313 = vmatpush2.bf16.msra.mxu0 0
    %314 = vmatprep.subr.bf16.mxu0 0
    %315 = vmatpush2.bf16.msra.mxu0 0
    %316 = vmatprep.subr.bf16.mxu0 0
    %317 = vmatpush2.bf16.msra.mxu0 0
    %318 = vmatprep.mubr.bf16.mxu0 0
    %319 = vmatmul.mubr.bf16.gmra.mxu0 %v215
    %v320 = vpop.f32.mrf.mxu0
    %v321 = vadd.f32 %v237, %v320
    %v322 = vpop.f32.mrf.mxu0
    %v323 = vpop.f32.mrf.mxu0
    %v324 = vpop.f32.mrf.mxu0
    %325 = vdwg.mxu0
    %v326 = vsel %vm186, %v321, 0.0
    %327 = vadd.xlane.f32.xlu0 %v326
    %v328 = vpop.xlane.xlu0 %327
    %v329 = vmul.f32 %v321, %v321
    %v330 = vsel %vm186, %v329, 0.0
    %331 = vadd.xlane.f32.xlu0 %v330
    %v332 = vpop.xlane.xlu0 %331
    %v333 = vmul.f32 %v328, 0.03125
    %v334 = vmul.f32 %v332, 0.03125
    %v335 = vmul.f32 %v333, %v333
    %v336 = vsub.f32 %v334, %v335
    %v337 = vsub.f32 %v321, %v333
    %v338 = vadd.f32 %v336, 1e-05
    %v339 = vrsqrt.pop %v338
    %v340 = vmul.f32 %v337, %v339
    %v341 = vld [vmem:[#allocation5 + $0x1] sm:$0x1]
    %v342 = vlaneseq
    %v343 = vshrl.u32 %v342, 7
    %v344 = vsub.s32 0, %v343
    %v345 = vrot.slane %v341, %v344
    %v346 = vmul.f32 %v340, %v345
    %v347 = vld [vmem:[#allocation7 + $0x1] sm:$0x1]
    %v348 = vlaneseq
    %v349 = vshrl.u32 %v348, 7
    %v350 = vsub.s32 0, %v349
    %v351 = vrot.slane %v347, %v350
    %v352 = vadd.f32 %v346, %v351
    %v353 = vmax.f32 %v352, 0.0
    %v354 = vpack.c.bf16 %v73, %v73
    %s355 = scalar_lea.vmem [#allocation2], 128
    %v356 = vld [vmem:[%s355] sm:$0xf]
    %v357 = vld [vmem:[%s355 + $0x4] sm:$0xf]
    %v358 = vld [vmem:[%s355 + $0x8] sm:$0xf]
    %v359 = vld [vmem:[%s355 + $0xc] sm:$0xf]
    %v360 = vld [vmem:[%s355 + $0x10] sm:$0xf]
    %v361 = vld [vmem:[%s355 + $0x14] sm:$0xf]
    %v362 = vld [vmem:[%s355 + $0x18] sm:$0xf]
    %v363 = vld [vmem:[%s355 + $0x1c] sm:$0xf]
    %v364 = vld [vmem:[%s355 + $0x20] sm:$0xf]
    %v365 = vld [vmem:[%s355 + $0x24] sm:$0xf]
    %v366 = vld [vmem:[%s355 + $0x28] sm:$0xf]
    %v367 = vld [vmem:[%s355 + $0x2c] sm:$0xf]
    %v368 = vld [vmem:[%s355 + $0x30] sm:$0xf]
    %v369 = vld [vmem:[%s355 + $0x34] sm:$0xf]
    %v370 = vld [vmem:[%s355 + $0x38] sm:$0xf]
    %v371 = vld [vmem:[%s355 + $0x3c] sm:$0xf]
    %v372 = vld [vmem:[%s5 + $0x2] sm:$0x1]
    %v373 = vlaneseq
    %v374 = vshrl.u32 %v373, 7
    %v375 = vsub.s32 0, %v374
    %v376 = vrot.slane %v372, %v375
    %v393 = vunpack.c.l.b16 %v356
    %v394 = vunpack.c.l.b16 %v357
    %v395 = vunpack.c.l.b16 %v358
    %v396 = vunpack.c.l.b16 %v359
    %v397 = vunpack.c.l.b16 %v360
    %v398 = vunpack.c.l.b16 %v361
    %v399 = vunpack.c.l.b16 %v362
    %v400 = vunpack.c.l.b16 %v363
    %v401 = vunpack.c.l.b16 %v364
    %v402 = vunpack.c.l.b16 %v365
    %v403 = vunpack.c.l.b16 %v366
    %v404 = vunpack.c.l.b16 %v367
    %v405 = vunpack.c.l.b16 %v368
    %v406 = vunpack.c.l.b16 %v369
    %v407 = vunpack.c.l.b16 %v370
    %v408 = vunpack.c.l.b16 %v371
    %v409 = vpack.c.b16 %v394, %v393
    %v410 = vpack.c.b16 %v396, %v395
    %v411 = vpack.c.b16 %v398, %v397
    %v412 = vpack.c.b16 %v400, %v399
    %v413 = vpack.c.b16 %v402, %v401
    %v414 = vpack.c.b16 %v404, %v403
    %v415 = vpack.c.b16 %v406, %v405
    %v416 = vpack.c.b16 %v408, %v407
    %425 = vmatprep.subr.bf16.mxu0 0
    %426 = vmatpush1.bf16.msra.mxu0 %v416
    %427 = vmatprep.subr.bf16.mxu0 0
    %428 = vmatpush1.bf16.msra.mxu0 %v415
    %429 = vmatprep.subr.bf16.mxu0 0
    %430 = vmatpush1.bf16.msra.mxu0 %v414
    %431 = vmatprep.subr.bf16.mxu0 0
    %432 = vmatpush1.bf16.msra.mxu0 %v413
    %433 = vmatprep.subr.bf16.mxu0 0
    %434 = vmatpush1.bf16.msra.mxu0 %v412
    %435 = vmatprep.subr.bf16.mxu0 0
    %436 = vmatpush1.bf16.msra.mxu0 %v411
    %437 = vmatprep.subr.bf16.mxu0 0
    %438 = vmatpush1.bf16.msra.mxu0 %v410
    %439 = vmatprep.subr.bf16.mxu0 0
    %440 = vmatpush1.bf16.msra.mxu0 %v409
    %441 = vmatprep.subr.bf16.mxu0 0
    %442 = vmatpush2.bf16.msra.mxu0 0
    %443 = vmatprep.subr.bf16.mxu0 0
    %444 = vmatpush2.bf16.msra.mxu0 0
    %445 = vmatprep.subr.bf16.mxu0 0
    %446 = vmatpush2.bf16.msra.mxu0 0
    %447 = vmatprep.subr.bf16.mxu0 0
    %448 = vmatpush2.bf16.msra.mxu0 0
    %449 = vmatprep.subr.bf16.mxu0 0
    %450 = vmatpush2.bf16.msra.mxu0 0
    %451 = vmatprep.subr.bf16.mxu0 0
    %452 = vmatpush2.bf16.msra.mxu0 0
    %453 = vmatprep.subr.bf16.mxu0 0
    %454 = vmatpush2.bf16.msra.mxu0 0
    %455 = vmatprep.subr.bf16.mxu0 0
    %456 = vmatpush2.bf16.msra.mxu0 0
    %457 = vmatprep.mubr.bf16.mxu0 0
    %458 = vmatmul.mubr.bf16.gmra.mxu0 %v354
    %v459 = vpop.f32.mrf.mxu0
    %v460 = vadd.f32 %v376, %v459
    %v461 = vpop.f32.mrf.mxu0
    %v462 = vpop.f32.mrf.mxu0
    %v463 = vpop.f32.mrf.mxu0
    %464 = vdwg.mxu0
    %v465 = vsel %vm186, %v460, 0.0
    %466 = vadd.xlane.f32.xlu0 %v465
    %v467 = vpop.xlane.xlu0 %466
    %v468 = vmul.f32 %v460, %v460
    %v469 = vsel %vm186, %v468, 0.0
    %470 = vadd.xlane.f32.xlu0 %v469
    %v471 = vpop.xlane.xlu0 %470
    %v472 = vmul.f32 %v467, 0.03125
    %v473 = vmul.f32 %v471, 0.03125
    %v474 = vmul.f32 %v472, %v472
    %v475 = vsub.f32 %v473, %v474
    %v476 = vsub.f32 %v460, %v472
    %v477 = vadd.f32 %v475, 1e-05
    %v478 = vrsqrt.pop %v477
    %v479 = vmul.f32 %v476, %v478
    %v480 = vld [vmem:[#allocation5 + $0x2] sm:$0x1]
    %v481 = vlaneseq
    %v482 = vshrl.u32 %v481, 7
    %v483 = vsub.s32 0, %v482
    %v484 = vrot.slane %v480, %v483
    %v485 = vmul.f32 %v479, %v484
    %v486 = vld [vmem:[#allocation7 + $0x2] sm:$0x1]
    %v487 = vlaneseq
    %v488 = vshrl.u32 %v487, 7
    %v489 = vsub.s32 0, %v488
    %v490 = vrot.slane %v486, %v489
    %v491 = vadd.f32 %v485, %v490
    %v492 = vmax.f32 %v491, 0.0
    %v493 = vpack.c.bf16 %v492, %v492
    %s494 = scalar_lea.vmem [#allocation2], 192
    %v495 = vld [vmem:[%s494] sm:$0xf]
    %v496 = vld [vmem:[%s494 + $0x4] sm:$0xf]
    %v497 = vld [vmem:[%s494 + $0x8] sm:$0xf]
    %v498 = vld [vmem:[%s494 + $0xc] sm:$0xf]
    %v499 = vld [vmem:[%s494 + $0x10] sm:$0xf]
    %v500 = vld [vmem:[%s494 + $0x14] sm:$0xf]
    %v501 = vld [vmem:[%s494 + $0x18] sm:$0xf]
    %v502 = vld [vmem:[%s494 + $0x1c] sm:$0xf]
    %v503 = vld [vmem:[%s494 + $0x20] sm:$0xf]
    %v504 = vld [vmem:[%s494 + $0x24] sm:$0xf]
    %v505 = vld [vmem:[%s494 + $0x28] sm:$0xf]
    %v506 = vld [vmem:[%s494 + $0x2c] sm:$0xf]
    %v507 = vld [vmem:[%s494 + $0x30] sm:$0xf]
    %v508 = vld [vmem:[%s494 + $0x34] sm:$0xf]
    %v509 = vld [vmem:[%s494 + $0x38] sm:$0xf]
    %v510 = vld [vmem:[%s494 + $0x3c] sm:$0xf]
    %v511 = vld [vmem:[%s5 + $0x3] sm:$0x1]
    %v512 = vlaneseq
    %v513 = vshrl.u32 %v512, 7
    %v514 = vsub.s32 0, %v513
    %v515 = vrot.slane %v511, %v514
    %v532 = vunpack.c.l.b16 %v495
    %v533 = vunpack.c.l.b16 %v496
    %v534 = vunpack.c.l.b16 %v497
    %v535 = vunpack.c.l.b16 %v498
    %v536 = vunpack.c.l.b16 %v499
    %v537 = vunpack.c.l.b16 %v500
    %v538 = vunpack.c.l.b16 %v501
    %v539 = vunpack.c.l.b16 %v502
    %v540 = vunpack.c.l.b16 %v503
    %v541 = vunpack.c.l.b16 %v504
    %v542 = vunpack.c.l.b16 %v505
    %v543 = vunpack.c.l.b16 %v506
    %v544 = vunpack.c.l.b16 %v507
    %v545 = vunpack.c.l.b16 %v508
    %v546 = vunpack.c.l.b16 %v509
    %v547 = vunpack.c.l.b16 %v510
    %v548 = vpack.c.b16 %v533, %v532
    %v549 = vpack.c.b16 %v535, %v534
    %v550 = vpack.c.b16 %v537, %v536
    %v551 = vpack.c.b16 %v539, %v538
    %v552 = vpack.c.b16 %v541, %v540
    %v553 = vpack.c.b16 %v543, %v542
    %v554 = vpack.c.b16 %v545, %v544
    %v555 = vpack.c.b16 %v547, %v546
    %564 = vmatprep.subr.bf16.mxu0 0
    %565 = vmatpush1.bf16.msra.mxu0 %v555
    %566 = vmatprep.subr.bf16.mxu0 0
    %567 = vmatpush1.bf16.msra.mxu0 %v554
    %568 = vmatprep.subr.bf16.mxu0 0
    %569 = vmatpush1.bf16.msra.mxu0 %v553
    %570 = vmatprep.subr.bf16.mxu0 0
    %571 = vmatpush1.bf16.msra.mxu0 %v552
    %572 = vmatprep.subr.bf16.mxu0 0
    %573 = vmatpush1.bf16.msra.mxu0 %v551
    %574 = vmatprep.subr.bf16.mxu0 0
    %575 = vmatpush1.bf16.msra.mxu0 %v550
    %576 = vmatprep.subr.bf16.mxu0 0
    %577 = vmatpush1.bf16.msra.mxu0 %v549
    %578 = vmatprep.subr.bf16.mxu0 0
    %579 = vmatpush1.bf16.msra.mxu0 %v548
    %580 = vmatprep.subr.bf16.mxu0 0
    %581 = vmatpush2.bf16.msra.mxu0 0
    %582 = vmatprep.subr.bf16.mxu0 0
    %583 = vmatpush2.bf16.msra.mxu0 0
    %584 = vmatprep.subr.bf16.mxu0 0
    %585 = vmatpush2.bf16.msra.mxu0 0
    %586 = vmatprep.subr.bf16.mxu0 0
    %587 = vmatpush2.bf16.msra.mxu0 0
    %588 = vmatprep.subr.bf16.mxu0 0
    %589 = vmatpush2.bf16.msra.mxu0 0
    %590 = vmatprep.subr.bf16.mxu0 0
    %591 = vmatpush2.bf16.msra.mxu0 0
    %592 = vmatprep.subr.bf16.mxu0 0
    %593 = vmatpush2.bf16.msra.mxu0 0
    %594 = vmatprep.subr.bf16.mxu0 0
    %595 = vmatpush2.bf16.msra.mxu0 0
    %596 = vmatprep.mubr.bf16.mxu0 0
    %597 = vmatmul.mubr.bf16.gmra.mxu0 %v493
    %v598 = vpop.f32.mrf.mxu0
    %v599 = vadd.f32 %v515, %v598
    %v600 = vpop.f32.mrf.mxu0
    %v601 = vpop.f32.mrf.mxu0
    %v602 = vpop.f32.mrf.mxu0
    %603 = vdwg.mxu0
    %v604 = vsel %vm186, %v599, 0.0
    %605 = vadd.xlane.f32.xlu0 %v604
    %v606 = vpop.xlane.xlu0 %605
    %v607 = vmul.f32 %v599, %v599
    %v608 = vsel %vm186, %v607, 0.0
    %609 = vadd.xlane.f32.xlu0 %v608
    %v610 = vpop.xlane.xlu0 %609
    %v611 = vmul.f32 %v606, 0.03125
    %v612 = vmul.f32 %v610, 0.03125
    %v613 = vmul.f32 %v611, %v611
    %v614 = vsub.f32 %v612, %v613
    %v615 = vsub.f32 %v599, %v611
    %v616 = vadd.f32 %v614, 1e-05
    %v617 = vrsqrt.pop %v616
    %v618 = vmul.f32 %v615, %v617
    %v619 = vld [vmem:[#allocation5 + $0x3] sm:$0x1]
    %v620 = vlaneseq
    %v621 = vshrl.u32 %v620, 7
    %v622 = vsub.s32 0, %v621
    %v623 = vrot.slane %v619, %v622
    %v624 = vmul.f32 %v618, %v623
    %v625 = vld [vmem:[#allocation7 + $0x3] sm:$0x1]
    %v626 = vlaneseq
    %v627 = vshrl.u32 %v626, 7
    %v628 = vsub.s32 0, %v627
    %v629 = vrot.slane %v625, %v628
    %v630 = vadd.f32 %v624, %v629
    %v631 = vmax.f32 %v630, 0.0
    %v632 = vpack.c.bf16 %v353, %v353
    %s633 = scalar_lea.vmem [#allocation2], 256
    %v634 = vld [vmem:[%s633] sm:$0xf]
    %v635 = vld [vmem:[%s633 + $0x4] sm:$0xf]
    %v636 = vld [vmem:[%s633 + $0x8] sm:$0xf]
    %v637 = vld [vmem:[%s633 + $0xc] sm:$0xf]
    %v638 = vld [vmem:[%s633 + $0x10] sm:$0xf]
    %v639 = vld [vmem:[%s633 + $0x14] sm:$0xf]
    %v640 = vld [vmem:[%s633 + $0x18] sm:$0xf]
    %v641 = vld [vmem:[%s633 + $0x1c] sm:$0xf]
    %v642 = vld [vmem:[%s633 + $0x20] sm:$0xf]
    %v643 = vld [vmem:[%s633 + $0x24] sm:$0xf]
    %v644 = vld [vmem:[%s633 + $0x28] sm:$0xf]
    %v645 = vld [vmem:[%s633 + $0x2c] sm:$0xf]
    %v646 = vld [vmem:[%s633 + $0x30] sm:$0xf]
    %v647 = vld [vmem:[%s633 + $0x34] sm:$0xf]
    %v648 = vld [vmem:[%s633 + $0x38] sm:$0xf]
    %v649 = vld [vmem:[%s633 + $0x3c] sm:$0xf]
    %v650 = vpack.c.bf16 %v631, %v631
    %s651 = scalar_lea.vmem [#allocation2], 320
    %v652 = vld [vmem:[%s651] sm:$0xf]
    %v653 = vld [vmem:[%s651 + $0x4] sm:$0xf]
    %v654 = vld [vmem:[%s651 + $0x8] sm:$0xf]
    %v655 = vld [vmem:[%s651 + $0xc] sm:$0xf]
    %v656 = vld [vmem:[%s651 + $0x10] sm:$0xf]
    %v657 = vld [vmem:[%s651 + $0x14] sm:$0xf]
    %v658 = vld [vmem:[%s651 + $0x18] sm:$0xf]
    %v659 = vld [vmem:[%s651 + $0x1c] sm:$0xf]
    %v660 = vld [vmem:[%s651 + $0x20] sm:$0xf]
    %v661 = vld [vmem:[%s651 + $0x24] sm:$0xf]
    %v662 = vld [vmem:[%s651 + $0x28] sm:$0xf]
    %v663 = vld [vmem:[%s651 + $0x2c] sm:$0xf]
    %v664 = vld [vmem:[%s651 + $0x30] sm:$0xf]
    %v665 = vld [vmem:[%s651 + $0x34] sm:$0xf]
    %v666 = vld [vmem:[%s651 + $0x38] sm:$0xf]
    %v667 = vld [vmem:[%s651 + $0x3c] sm:$0xf]
    %v684 = vunpack.c.l.b16 %v652
    %v685 = vunpack.c.l.b16 %v653
    %v686 = vunpack.c.l.b16 %v654
    %v687 = vunpack.c.l.b16 %v655
    %v688 = vunpack.c.l.b16 %v656
    %v689 = vunpack.c.l.b16 %v657
    %v690 = vunpack.c.l.b16 %v658
    %v691 = vunpack.c.l.b16 %v659
    %v692 = vunpack.c.l.b16 %v660
    %v693 = vunpack.c.l.b16 %v661
    %v694 = vunpack.c.l.b16 %v662
    %v695 = vunpack.c.l.b16 %v663
    %v696 = vunpack.c.l.b16 %v664
    %v697 = vunpack.c.l.b16 %v665
    %v698 = vunpack.c.l.b16 %v666
    %v699 = vunpack.c.l.b16 %v667
    %v700 = vpack.c.b16 %v685, %v684
    %v701 = vpack.c.b16 %v687, %v686
    %v702 = vpack.c.b16 %v689, %v688
    %v703 = vpack.c.b16 %v691, %v690
    %v704 = vpack.c.b16 %v693, %v692
    %v705 = vpack.c.b16 %v695, %v694
    %v706 = vpack.c.b16 %v697, %v696
    %v707 = vpack.c.b16 %v699, %v698
    %716 = vmatprep.subr.bf16.mxu0 0
    %717 = vmatpush1.bf16.msra.mxu0 %v707
    %718 = vmatprep.subr.bf16.mxu0 0
    %719 = vmatpush1.bf16.msra.mxu0 %v706
    %720 = vmatprep.subr.bf16.mxu0 0
    %721 = vmatpush1.bf16.msra.mxu0 %v705
    %722 = vmatprep.subr.bf16.mxu0 0
    %723 = vmatpush1.bf16.msra.mxu0 %v704
    %724 = vmatprep.subr.bf16.mxu0 0
    %725 = vmatpush1.bf16.msra.mxu0 %v703
    %726 = vmatprep.subr.bf16.mxu0 0
    %727 = vmatpush1.bf16.msra.mxu0 %v702
    %728 = vmatprep.subr.bf16.mxu0 0
    %729 = vmatpush1.bf16.msra.mxu0 %v701
    %730 = vmatprep.subr.bf16.mxu0 0
    %731 = vmatpush1.bf16.msra.mxu0 %v700
    %732 = vmatprep.subr.bf16.mxu0 0
    %733 = vmatpush2.bf16.msra.mxu0 0
    %734 = vmatprep.subr.bf16.mxu0 0
    %735 = vmatpush2.bf16.msra.mxu0 0
    %736 = vmatprep.subr.bf16.mxu0 0
    %737 = vmatpush2.bf16.msra.mxu0 0
    %738 = vmatprep.subr.bf16.mxu0 0
    %739 = vmatpush2.bf16.msra.mxu0 0
    %740 = vmatprep.subr.bf16.mxu0 0
    %741 = vmatpush2.bf16.msra.mxu0 0
    %742 = vmatprep.subr.bf16.mxu0 0
    %743 = vmatpush2.bf16.msra.mxu0 0
    %744 = vmatprep.subr.bf16.mxu0 0
    %745 = vmatpush2.bf16.msra.mxu0 0
    %746 = vmatprep.subr.bf16.mxu0 0
    %747 = vmatpush2.bf16.msra.mxu0 0
    %748 = vmatprep.mubr.bf16.mxu0 0
    %749 = vmatmul.mubr.bf16.gmra.mxu0 %v650
    %v750 = vpop.f32.mrf.mxu0
    %v751 = vadd.f32 0.0, %v750
    %v752 = vpop.f32.mrf.mxu0
    %v753 = vpop.f32.mrf.mxu0
    %v754 = vpop.f32.mrf.mxu0
    %755 = vdwg.mxu0
    %v772 = vunpack.c.l.b16 %v634
    %v773 = vunpack.c.l.b16 %v635
    %v774 = vunpack.c.l.b16 %v636
    %v775 = vunpack.c.l.b16 %v637
    %v776 = vunpack.c.l.b16 %v638
    %v777 = vunpack.c.l.b16 %v639
    %v778 = vunpack.c.l.b16 %v640
    %v779 = vunpack.c.l.b16 %v641
    %v780 = vunpack.c.l.b16 %v642
    %v781 = vunpack.c.l.b16 %v643
    %v782 = vunpack.c.l.b16 %v644
    %v783 = vunpack.c.l.b16 %v645
    %v784 = vunpack.c.l.b16 %v646
    %v785 = vunpack.c.l.b16 %v647
    %v786 = vunpack.c.l.b16 %v648
    %v787 = vunpack.c.l.b16 %v649
    %v788 = vpack.c.b16 %v773, %v772
    %v789 = vpack.c.b16 %v775, %v774
    %v790 = vpack.c.b16 %v777, %v776
    %v791 = vpack.c.b16 %v779, %v778
    %v792 = vpack.c.b16 %v781, %v780
    %v793 = vpack.c.b16 %v783, %v782
    %v794 = vpack.c.b16 %v785, %v784
    %v795 = vpack.c.b16 %v787, %v786
    %804 = vmatprep.subr.bf16.mxu0 0
    %805 = vmatpush1.bf16.msra.mxu0 %v795
    %806 = vmatprep.subr.bf16.mxu0 0
    %807 = vmatpush1.bf16.msra.mxu0 %v794
    %808 = vmatprep.subr.bf16.mxu0 0
    %809 = vmatpush1.bf16.msra.mxu0 %v793
    %810 = vmatprep.subr.bf16.mxu0 0
    %811 = vmatpush1.bf16.msra.mxu0 %v792
    %812 = vmatprep.subr.bf16.mxu0 0
    %813 = vmatpush1.bf16.msra.mxu0 %v791
    %814 = vmatprep.subr.bf16.mxu0 0
    %815 = vmatpush1.bf16.msra.mxu0 %v790
    %816 = vmatprep.subr.bf16.mxu0 0
    %817 = vmatpush1.bf16.msra.mxu0 %v789
    %818 = vmatprep.subr.bf16.mxu0 0
    %819 = vmatpush1.bf16.msra.mxu0 %v788
    %820 = vmatprep.subr.bf16.mxu0 0
    %821 = vmatpush2.bf16.msra.mxu0 0
    %822 = vmatprep.subr.bf16.mxu0 0
    %823 = vmatpush2.bf16.msra.mxu0 0
    %824 = vmatprep.subr.bf16.mxu0 0
    %825 = vmatpush2.bf16.msra.mxu0 0
    %826 = vmatprep.subr.bf16.mxu0 0
    %827 = vmatpush2.bf16.msra.mxu0 0
    %828 = vmatprep.subr.bf16.mxu0 0
    %829 = vmatpush2.bf16.msra.mxu0 0
    %830 = vmatprep.subr.bf16.mxu0 0
    %831 = vmatpush2.bf16.msra.mxu0 0
    %832 = vmatprep.subr.bf16.mxu0 0
    %833 = vmatpush2.bf16.msra.mxu0 0
    %834 = vmatprep.subr.bf16.mxu0 0
    %835 = vmatpush2.bf16.msra.mxu0 0
    %836 = vmatprep.mubr.bf16.mxu0 0
    %837 = vmatmul.mubr.bf16.gmra.mxu0 %v632
    %v838 = vpop.f32.mrf.mxu0
    %v839 = vadd.f32 %v751, %v838
    %v840 = vpop.f32.mrf.mxu0
    %v841 = vpop.f32.mrf.mxu0
    %v842 = vpop.f32.mrf.mxu0
    %843 = vdwg.mxu0
    %v844 = vld [vmem:[%s5 + $0x4] sm:$0x1]
    %v845 = vlaneseq
    %v846 = vshrl.u32 %v845, 7
    %v847 = vsub.s32 0, %v846
    %v848 = vrot.slane %v844, %v847
    %v849 = vadd.f32 %v839, %v848
    %v850 = vsel %vm186, %v849, 0.0
    %851 = vadd.xlane.f32.xlu0 %v850
    %v852 = vpop.xlane.xlu0 %851
    %v853 = vmul.f32 %v849, %v849
    %v854 = vsel %vm186, %v853, 0.0
    %855 = vadd.xlane.f32.xlu0 %v854
    %v856 = vpop.xlane.xlu0 %855
    %v857 = vmul.f32 %v852, 0.015625
    %v858 = vmul.f32 %v856, 0.015625
    %v859 = vmul.f32 %v857, %v857
    %v860 = vsub.f32 %v858, %v859
    %v861 = vsub.f32 %v849, %v857
    %v862 = vadd.f32 %v860, 1e-05
    %v863 = vrsqrt.pop %v862
    %v864 = vmul.f32 %v861, %v863
    %v865 = vld [vmem:[#allocation5 + $0x4] sm:$0x1]
    %v866 = vlaneseq
    %v867 = vshrl.u32 %v866, 7
    %v868 = vsub.s32 0, %v867
    %v869 = vrot.slane %v865, %v868
    %v870 = vmul.f32 %v864, %v869
    %v871 = vld [vmem:[#allocation7 + $0x4] sm:$0x1]
    %v872 = vlaneseq
    %v873 = vshrl.u32 %v872, 7
    %v874 = vsub.s32 0, %v873
    %v875 = vrot.slane %v871, %v874
    %v876 = vadd.f32 %v870, %v875
    %v877 = vmax.f32 %v876, 0.0
    %v878 = vpack.c.bf16 %v877, %v877
    %s879 = scalar_lea.vmem [#allocation2], 384
    %v880 = vld [vmem:[%s879] sm:$0xf]
    %v881 = vld [vmem:[%s879 + $0x4] sm:$0xf]
    %v882 = vld [vmem:[%s879 + $0x8] sm:$0xf]
    %v883 = vld [vmem:[%s879 + $0xc] sm:$0xf]
    %v884 = vld [vmem:[%s879 + $0x10] sm:$0xf]
    %v885 = vld [vmem:[%s879 + $0x14] sm:$0xf]
    %v886 = vld [vmem:[%s879 + $0x18] sm:$0xf]
    %v887 = vld [vmem:[%s879 + $0x1c] sm:$0xf]
    %v888 = vld [vmem:[%s879 + $0x20] sm:$0xf]
    %v889 = vld [vmem:[%s879 + $0x24] sm:$0xf]
    %v890 = vld [vmem:[%s879 + $0x28] sm:$0xf]
    %v891 = vld [vmem:[%s879 + $0x2c] sm:$0xf]
    %v892 = vld [vmem:[%s879 + $0x30] sm:$0xf]
    %v893 = vld [vmem:[%s879 + $0x34] sm:$0xf]
    %v894 = vld [vmem:[%s879 + $0x38] sm:$0xf]
    %v895 = vld [vmem:[%s879 + $0x3c] sm:$0xf]
    %v896 = vld [vmem:[%s5 + $0x5] sm:$0x1]
    %v897 = vlaneseq
    %v898 = vshrl.u32 %v897, 7
    %v899 = vsub.s32 0, %v898
    %v900 = vrot.slane %v896, %v899
    %v917 = vunpack.c.l.b16 %v880
    %v918 = vunpack.c.l.b16 %v881
    %v919 = vunpack.c.l.b16 %v882
    %v920 = vunpack.c.l.b16 %v883
    %v921 = vunpack.c.l.b16 %v884
    %v922 = vunpack.c.l.b16 %v885
    %v923 = vunpack.c.l.b16 %v886
    %v924 = vunpack.c.l.b16 %v887
    %v925 = vunpack.c.l.b16 %v888
    %v926 = vunpack.c.l.b16 %v889
    %v927 = vunpack.c.l.b16 %v890
    %v928 = vunpack.c.l.b16 %v891
    %v929 = vunpack.c.l.b16 %v892
    %v930 = vunpack.c.l.b16 %v893
    %v931 = vunpack.c.l.b16 %v894
    %v932 = vunpack.c.l.b16 %v895
    %v933 = vpack.c.b16 %v918, %v917
    %v934 = vpack.c.b16 %v920, %v919
    %v935 = vpack.c.b16 %v922, %v921
    %v936 = vpack.c.b16 %v924, %v923
    %v937 = vpack.c.b16 %v926, %v925
    %v938 = vpack.c.b16 %v928, %v927
    %v939 = vpack.c.b16 %v930, %v929
    %v940 = vpack.c.b16 %v932, %v931
    %949 = vmatprep.subr.bf16.mxu0 0
    %950 = vmatpush1.bf16.msra.mxu0 %v940
    %951 = vmatprep.subr.bf16.mxu0 0
    %952 = vmatpush1.bf16.msra.mxu0 %v939
    %953 = vmatprep.subr.bf16.mxu0 0
    %954 = vmatpush1.bf16.msra.mxu0 %v938
    %955 = vmatprep.subr.bf16.mxu0 0
    %956 = vmatpush1.bf16.msra.mxu0 %v937
    %957 = vmatprep.subr.bf16.mxu0 0
    %958 = vmatpush1.bf16.msra.mxu0 %v936
    %959 = vmatprep.subr.bf16.mxu0 0
    %960 = vmatpush1.bf16.msra.mxu0 %v935
    %961 = vmatprep.subr.bf16.mxu0 0
    %962 = vmatpush1.bf16.msra.mxu0 %v934
    %963 = vmatprep.subr.bf16.mxu0 0
    %964 = vmatpush1.bf16.msra.mxu0 %v933
    %965 = vmatprep.subr.bf16.mxu0 0
    %966 = vmatpush2.bf16.msra.mxu0 0
    %967 = vmatprep.subr.bf16.mxu0 0
    %968 = vmatpush2.bf16.msra.mxu0 0
    %969 = vmatprep.subr.bf16.mxu0 0
    %970 = vmatpush2.bf16.msra.mxu0 0
    %971 = vmatprep.subr.bf16.mxu0 0
    %972 = vmatpush2.bf16.msra.mxu0 0
    %973 = vmatprep.subr.bf16.mxu0 0
    %974 = vmatpush2.bf16.msra.mxu0 0
    %975 = vmatprep.subr.bf16.mxu0 0
    %976 = vmatpush2.bf16.msra.mxu0 0
    %977 = vmatprep.subr.bf16.mxu0 0
    %978 = vmatpush2.bf16.msra.mxu0 0
    %979 = vmatprep.subr.bf16.mxu0 0
    %980 = vmatpush2.bf16.msra.mxu0 0
    %981 = vmatprep.mubr.bf16.mxu0 0
    %982 = vmatmul.mubr.bf16.gmra.mxu0 %v878
    %v983 = vpop.f32.mrf.mxu0
    %v984 = vadd.f32 %v900, %v983
    %v985 = vpop.f32.mrf.mxu0
    %v986 = vpop.f32.mrf.mxu0
    %v987 = vpop.f32.mrf.mxu0
    %988 = vdwg.mxu0
    %v989 = vsel %vm186, %v984, 0.0
    %990 = vadd.xlane.f32.xlu0 %v989
    %v991 = vpop.xlane.xlu0 %990
    %v992 = vmul.f32 %v984, %v984
    %v993 = vsel %vm186, %v992, 0.0
    %994 = vadd.xlane.f32.xlu0 %v993
    %v995 = vpop.xlane.xlu0 %994
    %v996 = vmul.f32 %v991, 0.03125
    %v997 = vmul.f32 %v995, 0.03125
    %v998 = vmul.f32 %v996, %v996
    %v999 = vsub.f32 %v997, %v998
    %v1000 = vsub.f32 %v984, %v996
    %v1001 = vadd.f32 %v999, 1e-05
    %v1002 = vrsqrt.pop %v1001
    %v1003 = vmul.f32 %v1000, %v1002
    %v1004 = vld [vmem:[#allocation5 + $0x5] sm:$0x1]
    %v1005 = vlaneseq
    %v1006 = vshrl.u32 %v1005, 7
    %v1007 = vsub.s32 0, %v1006
    %v1008 = vrot.slane %v1004, %v1007
    %v1009 = vmul.f32 %v1003, %v1008
    %v1010 = vld [vmem:[#allocation7 + $0x5] sm:$0x1]
    %v1011 = vlaneseq
    %v1012 = vshrl.u32 %v1011, 7
    %v1013 = vsub.s32 0, %v1012
    %v1014 = vrot.slane %v1010, %v1013
    %v1015 = vadd.f32 %v1009, %v1014
    %v1016 = vmax.f32 %v1015, 0.0
    %v1017 = vpack.c.bf16 %v1016, %v1016
    %s1018 = scalar_lea.vmem [#allocation2], 448
    %v1019 = vld [vmem:[%s1018] sm:$0xf]
    %v1020 = vld [vmem:[%s1018 + $0x4] sm:$0xf]
    %v1021 = vld [vmem:[%s1018 + $0x8] sm:$0xf]
    %v1022 = vld [vmem:[%s1018 + $0xc] sm:$0xf]
    %v1023 = vld [vmem:[%s1018 + $0x10] sm:$0xf]
    %v1024 = vld [vmem:[%s1018 + $0x14] sm:$0xf]
    %v1025 = vld [vmem:[%s1018 + $0x18] sm:$0xf]
    %v1026 = vld [vmem:[%s1018 + $0x1c] sm:$0xf]
    %v1027 = vld [vmem:[%s1018 + $0x20] sm:$0xf]
    %v1028 = vld [vmem:[%s1018 + $0x24] sm:$0xf]
    %v1029 = vld [vmem:[%s1018 + $0x28] sm:$0xf]
    %v1030 = vld [vmem:[%s1018 + $0x2c] sm:$0xf]
    %v1031 = vld [vmem:[%s1018 + $0x30] sm:$0xf]
    %v1032 = vld [vmem:[%s1018 + $0x34] sm:$0xf]
    %v1033 = vld [vmem:[%s1018 + $0x38] sm:$0xf]
    %v1034 = vld [vmem:[%s1018 + $0x3c] sm:$0xf]
    %v1035 = vpack.c.bf16 %v74, %v74
    %s1036 = scalar_lea.vmem [#allocation2], 512
    %v1037 = vld [vmem:[%s1036] sm:$0xf]
    %v1038 = vld [vmem:[%s1036 + $0x4] sm:$0xf]
    %v1039 = vld [vmem:[%s1036 + $0x8] sm:$0xf]
    %v1040 = vld [vmem:[%s1036 + $0xc] sm:$0xf]
    %v1041 = vld [vmem:[%s1036 + $0x10] sm:$0xf]
    %v1042 = vld [vmem:[%s1036 + $0x14] sm:$0xf]
    %v1043 = vld [vmem:[%s1036 + $0x18] sm:$0xf]
    %v1044 = vld [vmem:[%s1036 + $0x1c] sm:$0xf]
    %v1045 = vld [vmem:[%s1036 + $0x20] sm:$0xf]
    %v1046 = vld [vmem:[%s1036 + $0x24] sm:$0xf]
    %v1047 = vld [vmem:[%s1036 + $0x28] sm:$0xf]
    %v1048 = vld [vmem:[%s1036 + $0x2c] sm:$0xf]
    %v1049 = vld [vmem:[%s1036 + $0x30] sm:$0xf]
    %v1050 = vld [vmem:[%s1036 + $0x34] sm:$0xf]
    %v1051 = vld [vmem:[%s1036 + $0x38] sm:$0xf]
    %v1052 = vld [vmem:[%s1036 + $0x3c] sm:$0xf]
    %v1069 = vunpack.c.l.b16 %v1037
    %v1070 = vunpack.c.l.b16 %v1038
    %v1071 = vunpack.c.l.b16 %v1039
    %v1072 = vunpack.c.l.b16 %v1040
    %v1073 = vunpack.c.l.b16 %v1041
    %v1074 = vunpack.c.l.b16 %v1042
    %v1075 = vunpack.c.l.b16 %v1043
    %v1076 = vunpack.c.l.b16 %v1044
    %v1077 = vunpack.c.l.b16 %v1045
    %v1078 = vunpack.c.l.b16 %v1046
    %v1079 = vunpack.c.l.b16 %v1047
    %v1080 = vunpack.c.l.b16 %v1048
    %v1081 = vunpack.c.l.b16 %v1049
    %v1082 = vunpack.c.l.b16 %v1050
    %v1083 = vunpack.c.l.b16 %v1051
    %v1084 = vunpack.c.l.b16 %v1052
    %v1085 = vpack.c.b16 %v1070, %v1069
    %v1086 = vpack.c.b16 %v1072, %v1071
    %v1087 = vpack.c.b16 %v1074, %v1073
    %v1088 = vpack.c.b16 %v1076, %v1075
    %v1089 = vpack.c.b16 %v1078, %v1077
    %v1090 = vpack.c.b16 %v1080, %v1079
    %v1091 = vpack.c.b16 %v1082, %v1081
    %v1092 = vpack.c.b16 %v1084, %v1083
    %1101 = vmatprep.subr.bf16.mxu0 0
    %1102 = vmatpush1.bf16.msra.mxu0 %v1092
    %1103 = vmatprep.subr.bf16.mxu0 0
    %1104 = vmatpush1.bf16.msra.mxu0 %v1091
    %1105 = vmatprep.subr.bf16.mxu0 0
    %1106 = vmatpush1.bf16.msra.mxu0 %v1090
    %1107 = vmatprep.subr.bf16.mxu0 0
    %1108 = vmatpush1.bf16.msra.mxu0 %v1089
    %1109 = vmatprep.subr.bf16.mxu0 0
    %1110 = vmatpush1.bf16.msra.mxu0 %v1088
    %1111 = vmatprep.subr.bf16.mxu0 0
    %1112 = vmatpush1.bf16.msra.mxu0 %v1087
    %1113 = vmatprep.subr.bf16.mxu0 0
    %1114 = vmatpush1.bf16.msra.mxu0 %v1086
    %1115 = vmatprep.subr.bf16.mxu0 0
    %1116 = vmatpush1.bf16.msra.mxu0 %v1085
    %1117 = vmatprep.subr.bf16.mxu0 0
    %1118 = vmatpush2.bf16.msra.mxu0 0
    %1119 = vmatprep.subr.bf16.mxu0 0
    %1120 = vmatpush2.bf16.msra.mxu0 0
    %1121 = vmatprep.subr.bf16.mxu0 0
    %1122 = vmatpush2.bf16.msra.mxu0 0
    %1123 = vmatprep.subr.bf16.mxu0 0
    %1124 = vmatpush2.bf16.msra.mxu0 0
    %1125 = vmatprep.subr.bf16.mxu0 0
    %1126 = vmatpush2.bf16.msra.mxu0 0
    %1127 = vmatprep.subr.bf16.mxu0 0
    %1128 = vmatpush2.bf16.msra.mxu0 0
    %1129 = vmatprep.subr.bf16.mxu0 0
    %1130 = vmatpush2.bf16.msra.mxu0 0
    %1131 = vmatprep.subr.bf16.mxu0 0
    %1132 = vmatpush2.bf16.msra.mxu0 0
    %1133 = vmatprep.mubr.bf16.mxu0 0
    %1134 = vmatmul.mubr.bf16.gmra.mxu0 %v1035
    %v1135 = vpop.f32.mrf.mxu0
    %v1136 = vadd.f32 0.0, %v1135
    %v1137 = vpop.f32.mrf.mxu0
    %v1138 = vpop.f32.mrf.mxu0
    %v1139 = vpop.f32.mrf.mxu0
    %1140 = vdwg.mxu0
    %v1157 = vunpack.c.l.b16 %v1019
    %v1158 = vunpack.c.l.b16 %v1020
    %v1159 = vunpack.c.l.b16 %v1021
    %v1160 = vunpack.c.l.b16 %v1022
    %v1161 = vunpack.c.l.b16 %v1023
    %v1162 = vunpack.c.l.b16 %v1024
    %v1163 = vunpack.c.l.b16 %v1025
    %v1164 = vunpack.c.l.b16 %v1026
    %v1165 = vunpack.c.l.b16 %v1027
    %v1166 = vunpack.c.l.b16 %v1028
    %v1167 = vunpack.c.l.b16 %v1029
    %v1168 = vunpack.c.l.b16 %v1030
    %v1169 = vunpack.c.l.b16 %v1031
    %v1170 = vunpack.c.l.b16 %v1032
    %v1171 = vunpack.c.l.b16 %v1033
    %v1172 = vunpack.c.l.b16 %v1034
    %v1173 = vpack.c.b16 %v1158, %v1157
    %v1174 = vpack.c.b16 %v1160, %v1159
    %v1175 = vpack.c.b16 %v1162, %v1161
    %v1176 = vpack.c.b16 %v1164, %v1163
    %v1177 = vpack.c.b16 %v1166, %v1165
    %v1178 = vpack.c.b16 %v1168, %v1167
    %v1179 = vpack.c.b16 %v1170, %v1169
    %v1180 = vpack.c.b16 %v1172, %v1171
    %1189 = vmatprep.subr.bf16.mxu0 0
    %1190 = vmatpush1.bf16.msra.mxu0 %v1180
    %1191 = vmatprep.subr.bf16.mxu0 0
    %1192 = vmatpush1.bf16.msra.mxu0 %v1179
    %1193 = vmatprep.subr.bf16.mxu0 0
    %1194 = vmatpush1.bf16.msra.mxu0 %v1178
    %1195 = vmatprep.subr.bf16.mxu0 0
    %1196 = vmatpush1.bf16.msra.mxu0 %v1177
    %1197 = vmatprep.subr.bf16.mxu0 0
    %1198 = vmatpush1.bf16.msra.mxu0 %v1176
    %1199 = vmatprep.subr.bf16.mxu0 0
    %1200 = vmatpush1.bf16.msra.mxu0 %v1175
    %1201 = vmatprep.subr.bf16.mxu0 0
    %1202 = vmatpush1.bf16.msra.mxu0 %v1174
    %1203 = vmatprep.subr.bf16.mxu0 0
    %1204 = vmatpush1.bf16.msra.mxu0 %v1173
    %1205 = vmatprep.subr.bf16.mxu0 0
    %1206 = vmatpush2.bf16.msra.mxu0 0
    %1207 = vmatprep.subr.bf16.mxu0 0
    %1208 = vmatpush2.bf16.msra.mxu0 0
    %1209 = vmatprep.subr.bf16.mxu0 0
    %1210 = vmatpush2.bf16.msra.mxu0 0
    %1211 = vmatprep.subr.bf16.mxu0 0
    %1212 = vmatpush2.bf16.msra.mxu0 0
    %1213 = vmatprep.subr.bf16.mxu0 0
    %1214 = vmatpush2.bf16.msra.mxu0 0
    %1215 = vmatprep.subr.bf16.mxu0 0
    %1216 = vmatpush2.bf16.msra.mxu0 0
    %1217 = vmatprep.subr.bf16.mxu0 0
    %1218 = vmatpush2.bf16.msra.mxu0 0
    %1219 = vmatprep.subr.bf16.mxu0 0
    %1220 = vmatpush2.bf16.msra.mxu0 0
    %1221 = vmatprep.mubr.bf16.mxu0 0
    %1222 = vmatmul.mubr.bf16.gmra.mxu0 %v1017
    %v1223 = vpop.f32.mrf.mxu0
    %v1224 = vadd.f32 %v1136, %v1223
    %v1225 = vpop.f32.mrf.mxu0
    %v1226 = vpop.f32.mrf.mxu0
    %v1227 = vpop.f32.mrf.mxu0
    %1228 = vdwg.mxu0
    %v1229 = vld [vmem:[%s5 + $0x6] sm:$0x1]
    %v1230 = vlaneseq
    %v1231 = vshrl.u32 %v1230, 7
    %v1232 = vsub.s32 0, %v1231
    %v1233 = vrot.slane %v1229, %v1232
    %v1234 = vadd.f32 %v1224, %v1233
    %v1235 = vsel %vm186, %v1234, 0.0
    %1236 = vadd.xlane.f32.xlu0 %v1235
    %v1237 = vpop.xlane.xlu0 %1236
    %v1238 = vmul.f32 %v1234, %v1234
    %v1239 = vsel %vm186, %v1238, 0.0
    %1240 = vadd.xlane.f32.xlu0 %v1239
    %v1241 = vpop.xlane.xlu0 %1240
    %v1242 = vmul.f32 %v1237, 0.015625
    %v1243 = vmul.f32 %v1241, 0.015625
    %v1244 = vmul.f32 %v1242, %v1242
    %v1245 = vsub.f32 %v1243, %v1244
    %v1246 = vsub.f32 %v1234, %v1242
    %v1247 = vadd.f32 %v1245, 1e-05
    %v1248 = vrsqrt.pop %v1247
    %v1249 = vmul.f32 %v1246, %v1248
    %v1250 = vld [vmem:[#allocation5 + $0x6] sm:$0x1]
    %v1251 = vlaneseq
    %v1252 = vshrl.u32 %v1251, 7
    %v1253 = vsub.s32 0, %v1252
    %v1254 = vrot.slane %v1250, %v1253
    %v1255 = vmul.f32 %v1249, %v1254
    %v1256 = vld [vmem:[#allocation7 + $0x6] sm:$0x1]
    %v1257 = vlaneseq
    %v1258 = vshrl.u32 %v1257, 7
    %v1259 = vsub.s32 0, %v1258
    %v1260 = vrot.slane %v1256, %v1259
    %v1261 = vadd.f32 %v1255, %v1260
    %v1262 = vmax.f32 %v1261, 0.0
    %v1263 = vpack.c.bf16 %v1262, %v1262
    %s1264 = scalar_lea.vmem [#allocation2], 576
    %v1265 = vld [vmem:[%s1264] sm:$0xf]
    %v1266 = vld [vmem:[%s1264 + $0x4] sm:$0xf]
    %v1267 = vld [vmem:[%s1264 + $0x8] sm:$0xf]
    %v1268 = vld [vmem:[%s1264 + $0xc] sm:$0xf]
    %v1269 = vld [vmem:[%s1264 + $0x10] sm:$0xf]
    %v1270 = vld [vmem:[%s1264 + $0x14] sm:$0xf]
    %v1271 = vld [vmem:[%s1264 + $0x18] sm:$0xf]
    %v1272 = vld [vmem:[%s1264 + $0x1c] sm:$0xf]
    %v1273 = vld [vmem:[%s1264 + $0x20] sm:$0xf]
    %v1274 = vld [vmem:[%s1264 + $0x24] sm:$0xf]
    %v1275 = vld [vmem:[%s1264 + $0x28] sm:$0xf]
    %v1276 = vld [vmem:[%s1264 + $0x2c] sm:$0xf]
    %v1277 = vld [vmem:[%s1264 + $0x30] sm:$0xf]
    %v1278 = vld [vmem:[%s1264 + $0x34] sm:$0xf]
    %v1279 = vld [vmem:[%s1264 + $0x38] sm:$0xf]
    %v1280 = vld [vmem:[%s1264 + $0x3c] sm:$0xf]
    %v1281 = vld [vmem:[%s5 + $0x7] sm:$0x1]
    %v1282 = vlaneseq
    %v1283 = vshrl.u32 %v1282, 7
    %v1284 = vsub.s32 0, %v1283
    %v1285 = vrot.slane %v1281, %v1284
    %v1302 = vunpack.c.l.b16 %v1265
    %v1303 = vunpack.c.l.b16 %v1266
    %v1304 = vunpack.c.l.b16 %v1267
    %v1305 = vunpack.c.l.b16 %v1268
    %v1306 = vunpack.c.l.b16 %v1269
    %v1307 = vunpack.c.l.b16 %v1270
    %v1308 = vunpack.c.l.b16 %v1271
    %v1309 = vunpack.c.l.b16 %v1272
    %v1310 = vunpack.c.l.b16 %v1273
    %v1311 = vunpack.c.l.b16 %v1274
    %v1312 = vunpack.c.l.b16 %v1275
    %v1313 = vunpack.c.l.b16 %v1276
    %v1314 = vunpack.c.l.b16 %v1277
    %v1315 = vunpack.c.l.b16 %v1278
    %v1316 = vunpack.c.l.b16 %v1279
    %v1317 = vunpack.c.l.b16 %v1280
    %v1318 = vpack.c.b16 %v1303, %v1302
    %v1319 = vpack.c.b16 %v1305, %v1304
    %v1320 = vpack.c.b16 %v1307, %v1306
    %v1321 = vpack.c.b16 %v1309, %v1308
    %v1322 = vpack.c.b16 %v1311, %v1310
    %v1323 = vpack.c.b16 %v1313, %v1312
    %v1324 = vpack.c.b16 %v1315, %v1314
    %v1325 = vpack.c.b16 %v1317, %v1316
    %1334 = vmatprep.subr.bf16.mxu0 0
    %1335 = vmatpush1.bf16.msra.mxu0 %v1325
    %1336 = vmatprep.subr.bf16.mxu0 0
    %1337 = vmatpush1.bf16.msra.mxu0 %v1324
    %1338 = vmatprep.subr.bf16.mxu0 0
    %1339 = vmatpush1.bf16.msra.mxu0 %v1323
    %1340 = vmatprep.subr.bf16.mxu0 0
    %1341 = vmatpush1.bf16.msra.mxu0 %v1322
    %1342 = vmatprep.subr.bf16.mxu0 0
    %1343 = vmatpush1.bf16.msra.mxu0 %v1321
    %1344 = vmatprep.subr.bf16.mxu0 0
    %1345 = vmatpush1.bf16.msra.mxu0 %v1320
    %1346 = vmatprep.subr.bf16.mxu0 0
    %1347 = vmatpush1.bf16.msra.mxu0 %v1319
    %1348 = vmatprep.subr.bf16.mxu0 0
    %1349 = vmatpush1.bf16.msra.mxu0 %v1318
    %1350 = vmatprep.subr.bf16.mxu0 0
    %1351 = vmatpush2.bf16.msra.mxu0 0
    %1352 = vmatprep.subr.bf16.mxu0 0
    %1353 = vmatpush2.bf16.msra.mxu0 0
    %1354 = vmatprep.subr.bf16.mxu0 0
    %1355 = vmatpush2.bf16.msra.mxu0 0
    %1356 = vmatprep.subr.bf16.mxu0 0
    %1357 = vmatpush2.bf16.msra.mxu0 0
    %1358 = vmatprep.subr.bf16.mxu0 0
    %1359 = vmatpush2.bf16.msra.mxu0 0
    %1360 = vmatprep.subr.bf16.mxu0 0
    %1361 = vmatpush2.bf16.msra.mxu0 0
    %1362 = vmatprep.subr.bf16.mxu0 0
    %1363 = vmatpush2.bf16.msra.mxu0 0
    %1364 = vmatprep.subr.bf16.mxu0 0
    %1365 = vmatpush2.bf16.msra.mxu0 0
    %1366 = vmatprep.mubr.bf16.mxu0 0
    %1367 = vmatmul.mubr.bf16.gmra.mxu0 %v1263
    %v1368 = vpop.f32.mrf.mxu0
    %v1369 = vadd.f32 %v1285, %v1368
    %v1370 = vpop.f32.mrf.mxu0
    %v1371 = vpop.f32.mrf.mxu0
    %v1372 = vpop.f32.mrf.mxu0
    %1373 = vdwg.mxu0
    %v1374 = vsel %vm186, %v1369, 0.0
    %1375 = vadd.xlane.f32.xlu0 %v1374
    %v1376 = vpop.xlane.xlu0 %1375
    %v1377 = vmul.f32 %v1369, %v1369
    %v1378 = vsel %vm186, %v1377, 0.0
    %1379 = vadd.xlane.f32.xlu0 %v1378
    %v1380 = vpop.xlane.xlu0 %1379
    %v1381 = vmul.f32 %v1376, 0.03125
    %v1382 = vmul.f32 %v1380, 0.03125
    %v1383 = vmul.f32 %v1381, %v1381
    %v1384 = vsub.f32 %v1382, %v1383
    %v1385 = vsub.f32 %v1369, %v1381
    %v1386 = vadd.f32 %v1384, 1e-05
    %v1387 = vrsqrt.pop %v1386
    %v1388 = vmul.f32 %v1385, %v1387
    %v1389 = vld [vmem:[#allocation5 + $0x7] sm:$0x1]
    %v1390 = vlaneseq
    %v1391 = vshrl.u32 %v1390, 7
    %v1392 = vsub.s32 0, %v1391
    %v1393 = vrot.slane %v1389, %v1392
    %v1394 = vmul.f32 %v1388, %v1393
    %v1395 = vld [vmem:[#allocation7 + $0x7] sm:$0x1]
    %v1396 = vlaneseq
    %v1397 = vshrl.u32 %v1396, 7
    %v1398 = vsub.s32 0, %v1397
    %v1399 = vrot.slane %v1395, %v1398
    %v1400 = vadd.f32 %v1394, %v1399
    %v1401 = vmax.f32 %v1400, 0.0
    %v1402 = vpack.c.bf16 %v1401, %v1401
    %s1403 = scalar_lea.vmem [#allocation2], 640
    %v1404 = vld [vmem:[%s1403] sm:$0xf]
    %v1405 = vld [vmem:[%s1403 + $0x4] sm:$0xf]
    %v1406 = vld [vmem:[%s1403 + $0x8] sm:$0xf]
    %v1407 = vld [vmem:[%s1403 + $0xc] sm:$0xf]
    %v1408 = vld [vmem:[%s1403 + $0x10] sm:$0xf]
    %v1409 = vld [vmem:[%s1403 + $0x14] sm:$0xf]
    %v1410 = vld [vmem:[%s1403 + $0x18] sm:$0xf]
    %v1411 = vld [vmem:[%s1403 + $0x1c] sm:$0xf]
    %v1412 = vld [vmem:[%s1403 + $0x20] sm:$0xf]
    %v1413 = vld [vmem:[%s1403 + $0x24] sm:$0xf]
    %v1414 = vld [vmem:[%s1403 + $0x28] sm:$0xf]
    %v1415 = vld [vmem:[%s1403 + $0x2c] sm:$0xf]
    %v1416 = vld [vmem:[%s1403 + $0x30] sm:$0xf]
    %v1417 = vld [vmem:[%s1403 + $0x34] sm:$0xf]
    %v1418 = vld [vmem:[%s1403 + $0x38] sm:$0xf]
    %v1419 = vld [vmem:[%s1403 + $0x3c] sm:$0xf]
    %v1420 = vpack.c.bf16 %v75, %v75
    %s1421 = scalar_lea.vmem [#allocation2], 704
    %v1422 = vld [vmem:[%s1421] sm:$0xf]
    %v1423 = vld [vmem:[%s1421 + $0x4] sm:$0xf]
    %v1424 = vld [vmem:[%s1421 + $0x8] sm:$0xf]
    %v1425 = vld [vmem:[%s1421 + $0xc] sm:$0xf]
    %v1426 = vld [vmem:[%s1421 + $0x10] sm:$0xf]
    %v1427 = vld [vmem:[%s1421 + $0x14] sm:$0xf]
    %v1428 = vld [vmem:[%s1421 + $0x18] sm:$0xf]
    %v1429 = vld [vmem:[%s1421 + $0x1c] sm:$0xf]
    %v1430 = vld [vmem:[%s1421 + $0x20] sm:$0xf]
    %v1431 = vld [vmem:[%s1421 + $0x24] sm:$0xf]
    %v1432 = vld [vmem:[%s1421 + $0x28] sm:$0xf]
    %v1433 = vld [vmem:[%s1421 + $0x2c] sm:$0xf]
    %v1434 = vld [vmem:[%s1421 + $0x30] sm:$0xf]
    %v1435 = vld [vmem:[%s1421 + $0x34] sm:$0xf]
    %v1436 = vld [vmem:[%s1421 + $0x38] sm:$0xf]
    %v1437 = vld [vmem:[%s1421 + $0x3c] sm:$0xf]
    %v1454 = vunpack.c.l.b16 %v1422
    %v1455 = vunpack.c.l.b16 %v1423
    %v1456 = vunpack.c.l.b16 %v1424
    %v1457 = vunpack.c.l.b16 %v1425
    %v1458 = vunpack.c.l.b16 %v1426
    %v1459 = vunpack.c.l.b16 %v1427
    %v1460 = vunpack.c.l.b16 %v1428
    %v1461 = vunpack.c.l.b16 %v1429
    %v1462 = vunpack.c.l.b16 %v1430
    %v1463 = vunpack.c.l.b16 %v1431
    %v1464 = vunpack.c.l.b16 %v1432
    %v1465 = vunpack.c.l.b16 %v1433
    %v1466 = vunpack.c.l.b16 %v1434
    %v1467 = vunpack.c.l.b16 %v1435
    %v1468 = vunpack.c.l.b16 %v1436
    %v1469 = vunpack.c.l.b16 %v1437
    %v1470 = vpack.c.b16 %v1455, %v1454
    %v1471 = vpack.c.b16 %v1457, %v1456
    %v1472 = vpack.c.b16 %v1459, %v1458
    %v1473 = vpack.c.b16 %v1461, %v1460
    %v1474 = vpack.c.b16 %v1463, %v1462
    %v1475 = vpack.c.b16 %v1465, %v1464
    %v1476 = vpack.c.b16 %v1467, %v1466
    %v1477 = vpack.c.b16 %v1469, %v1468
    %1486 = vmatprep.subr.bf16.mxu0 0
    %1487 = vmatpush1.bf16.msra.mxu0 %v1477
    %1488 = vmatprep.subr.bf16.mxu0 0
    %1489 = vmatpush1.bf16.msra.mxu0 %v1476
    %1490 = vmatprep.subr.bf16.mxu0 0
    %1491 = vmatpush1.bf16.msra.mxu0 %v1475
    %1492 = vmatprep.subr.bf16.mxu0 0
    %1493 = vmatpush1.bf16.msra.mxu0 %v1474
    %1494 = vmatprep.subr.bf16.mxu0 0
    %1495 = vmatpush1.bf16.msra.mxu0 %v1473
    %1496 = vmatprep.subr.bf16.mxu0 0
    %1497 = vmatpush1.bf16.msra.mxu0 %v1472
    %1498 = vmatprep.subr.bf16.mxu0 0
    %1499 = vmatpush1.bf16.msra.mxu0 %v1471
    %1500 = vmatprep.subr.bf16.mxu0 0
    %1501 = vmatpush1.bf16.msra.mxu0 %v1470
    %1502 = vmatprep.subr.bf16.mxu0 0
    %1503 = vmatpush2.bf16.msra.mxu0 0
    %1504 = vmatprep.subr.bf16.mxu0 0
    %1505 = vmatpush2.bf16.msra.mxu0 0
    %1506 = vmatprep.subr.bf16.mxu0 0
    %1507 = vmatpush2.bf16.msra.mxu0 0
    %1508 = vmatprep.subr.bf16.mxu0 0
    %1509 = vmatpush2.bf16.msra.mxu0 0
    %1510 = vmatprep.subr.bf16.mxu0 0
    %1511 = vmatpush2.bf16.msra.mxu0 0
    %1512 = vmatprep.subr.bf16.mxu0 0
    %1513 = vmatpush2.bf16.msra.mxu0 0
    %1514 = vmatprep.subr.bf16.mxu0 0
    %1515 = vmatpush2.bf16.msra.mxu0 0
    %1516 = vmatprep.subr.bf16.mxu0 0
    %1517 = vmatpush2.bf16.msra.mxu0 0
    %1518 = vmatprep.mubr.bf16.mxu0 0
    %1519 = vmatmul.mubr.bf16.gmra.mxu0 %v1420
    %v1520 = vpop.f32.mrf.mxu0
    %v1521 = vadd.f32 0.0, %v1520
    %v1522 = vpop.f32.mrf.mxu0
    %v1523 = vpop.f32.mrf.mxu0
    %v1524 = vpop.f32.mrf.mxu0
    %1525 = vdwg.mxu0
    %v1542 = vunpack.c.l.b16 %v1404
    %v1543 = vunpack.c.l.b16 %v1405
    %v1544 = vunpack.c.l.b16 %v1406
    %v1545 = vunpack.c.l.b16 %v1407
    %v1546 = vunpack.c.l.b16 %v1408
    %v1547 = vunpack.c.l.b16 %v1409
    %v1548 = vunpack.c.l.b16 %v1410
    %v1549 = vunpack.c.l.b16 %v1411
    %v1550 = vunpack.c.l.b16 %v1412
    %v1551 = vunpack.c.l.b16 %v1413
    %v1552 = vunpack.c.l.b16 %v1414
    %v1553 = vunpack.c.l.b16 %v1415
    %v1554 = vunpack.c.l.b16 %v1416
    %v1555 = vunpack.c.l.b16 %v1417
    %v1556 = vunpack.c.l.b16 %v1418
    %v1557 = vunpack.c.l.b16 %v1419
    %v1558 = vpack.c.b16 %v1543, %v1542
    %v1559 = vpack.c.b16 %v1545, %v1544
    %v1560 = vpack.c.b16 %v1547, %v1546
    %v1561 = vpack.c.b16 %v1549, %v1548
    %v1562 = vpack.c.b16 %v1551, %v1550
    %v1563 = vpack.c.b16 %v1553, %v1552
    %v1564 = vpack.c.b16 %v1555, %v1554
    %v1565 = vpack.c.b16 %v1557, %v1556
    %1574 = vmatprep.subr.bf16.mxu0 0
    %1575 = vmatpush1.bf16.msra.mxu0 %v1565
    %1576 = vmatprep.subr.bf16.mxu0 0
    %1577 = vmatpush1.bf16.msra.mxu0 %v1564
    %1578 = vmatprep.subr.bf16.mxu0 0
    %1579 = vmatpush1.bf16.msra.mxu0 %v1563
    %1580 = vmatprep.subr.bf16.mxu0 0
    %1581 = vmatpush1.bf16.msra.mxu0 %v1562
    %1582 = vmatprep.subr.bf16.mxu0 0
    %1583 = vmatpush1.bf16.msra.mxu0 %v1561
    %1584 = vmatprep.subr.bf16.mxu0 0
    %1585 = vmatpush1.bf16.msra.mxu0 %v1560
    %1586 = vmatprep.subr.bf16.mxu0 0
    %1587 = vmatpush1.bf16.msra.mxu0 %v1559
    %1588 = vmatprep.subr.bf16.mxu0 0
    %1589 = vmatpush1.bf16.msra.mxu0 %v1558
    %1590 = vmatprep.subr.bf16.mxu0 0
    %1591 = vmatpush2.bf16.msra.mxu0 0
    %1592 = vmatprep.subr.bf16.mxu0 0
    %1593 = vmatpush2.bf16.msra.mxu0 0
    %1594 = vmatprep.subr.bf16.mxu0 0
    %1595 = vmatpush2.bf16.msra.mxu0 0
    %1596 = vmatprep.subr.bf16.mxu0 0
    %1597 = vmatpush2.bf16.msra.mxu0 0
    %1598 = vmatprep.subr.bf16.mxu0 0
    %1599 = vmatpush2.bf16.msra.mxu0 0
    %1600 = vmatprep.subr.bf16.mxu0 0
    %1601 = vmatpush2.bf16.msra.mxu0 0
    %1602 = vmatprep.subr.bf16.mxu0 0
    %1603 = vmatpush2.bf16.msra.mxu0 0
    %1604 = vmatprep.subr.bf16.mxu0 0
    %1605 = vmatpush2.bf16.msra.mxu0 0
    %1606 = vmatprep.mubr.bf16.mxu0 0
    %1607 = vmatmul.mubr.bf16.gmra.mxu0 %v1402
    %v1608 = vpop.f32.mrf.mxu0
    %v1609 = vadd.f32 %v1521, %v1608
    %v1610 = vpop.f32.mrf.mxu0
    %v1611 = vpop.f32.mrf.mxu0
    %v1612 = vpop.f32.mrf.mxu0
    %1613 = vdwg.mxu0
    %v1614 = vld [vmem:[%s5 + $0x8] sm:$0x1]
    %v1615 = vlaneseq
    %v1616 = vshrl.u32 %v1615, 7
    %v1617 = vsub.s32 0, %v1616
    %v1618 = vrot.slane %v1614, %v1617
    %v1619 = vadd.f32 %v1609, %v1618
    %v1620 = vsel %vm186, %v1619, 0.0
    %1621 = vadd.xlane.f32.xlu0 %v1620
    %v1622 = vpop.xlane.xlu0 %1621
    %v1623 = vmul.f32 %v1619, %v1619
    %v1624 = vsel %vm186, %v1623, 0.0
    %1625 = vadd.xlane.f32.xlu0 %v1624
    %v1626 = vpop.xlane.xlu0 %1625
    %v1627 = vmul.f32 %v1622, 0.03125
    %v1628 = vmul.f32 %v1626, 0.03125
    %v1629 = vmul.f32 %v1627, %v1627
    %v1630 = vsub.f32 %v1628, %v1629
    %v1631 = vsub.f32 %v1619, %v1627
    %v1632 = vadd.f32 %v1630, 1e-05
    %v1633 = vrsqrt.pop %v1632
    %v1634 = vmul.f32 %v1631, %v1633
    %v1635 = vld [vmem:[#allocation5 + $0x8] sm:$0x1]
    %v1636 = vlaneseq
    %v1637 = vshrl.u32 %v1636, 7
    %v1638 = vsub.s32 0, %v1637
    %v1639 = vrot.slane %v1635, %v1638
    %v1640 = vmul.f32 %v1634, %v1639
    %v1641 = vld [vmem:[#allocation7 + $0x8] sm:$0x1]
    %v1642 = vlaneseq
    %v1643 = vshrl.u32 %v1642, 7
    %v1644 = vsub.s32 0, %v1643
    %v1645 = vrot.slane %v1641, %v1644
    %v1646 = vadd.f32 %v1640, %v1645
    %v1647 = vmax.f32 %v1646, 0.0
    %v1648 = vpack.c.bf16 %v1647, %v1647
    %s1649 = scalar_lea.vmem [#allocation2], 768
    %v1650 = vld [vmem:[%s1649] sm:$0xf]
    %v1651 = vld [vmem:[%s1649 + $0x4] sm:$0xf]
    %v1652 = vld [vmem:[%s1649 + $0x8] sm:$0xf]
    %v1653 = vld [vmem:[%s1649 + $0xc] sm:$0xf]
    %v1654 = vld [vmem:[%s1649 + $0x10] sm:$0xf]
    %v1655 = vld [vmem:[%s1649 + $0x14] sm:$0xf]
    %v1656 = vld [vmem:[%s1649 + $0x18] sm:$0xf]
    %v1657 = vld [vmem:[%s1649 + $0x1c] sm:$0xf]
    %v1658 = vld [vmem:[%s1649 + $0x20] sm:$0xf]
    %v1659 = vld [vmem:[%s1649 + $0x24] sm:$0xf]
    %v1660 = vld [vmem:[%s1649 + $0x28] sm:$0xf]
    %v1661 = vld [vmem:[%s1649 + $0x2c] sm:$0xf]
    %v1662 = vld [vmem:[%s1649 + $0x30] sm:$0xf]
    %v1663 = vld [vmem:[%s1649 + $0x34] sm:$0xf]
    %v1664 = vld [vmem:[%s1649 + $0x38] sm:$0xf]
    %v1665 = vld [vmem:[%s1649 + $0x3c] sm:$0xf]
    %v1666 = vld [vmem:[%s5 + $0x9] sm:$0x1]
    %v1667 = vlaneseq
    %v1668 = vshrl.u32 %v1667, 7
    %v1669 = vsub.s32 0, %v1668
    %v1670 = vrot.slane %v1666, %v1669
    %v1687 = vunpack.c.l.b16 %v1650
    %v1688 = vunpack.c.l.b16 %v1651
    %v1689 = vunpack.c.l.b16 %v1652
    %v1690 = vunpack.c.l.b16 %v1653
    %v1691 = vunpack.c.l.b16 %v1654
    %v1692 = vunpack.c.l.b16 %v1655
    %v1693 = vunpack.c.l.b16 %v1656
    %v1694 = vunpack.c.l.b16 %v1657
    %v1695 = vunpack.c.l.b16 %v1658
    %v1696 = vunpack.c.l.b16 %v1659
    %v1697 = vunpack.c.l.b16 %v1660
    %v1698 = vunpack.c.l.b16 %v1661
    %v1699 = vunpack.c.l.b16 %v1662
    %v1700 = vunpack.c.l.b16 %v1663
    %v1701 = vunpack.c.l.b16 %v1664
    %v1702 = vunpack.c.l.b16 %v1665
    %v1703 = vpack.c.b16 %v1688, %v1687
    %v1704 = vpack.c.b16 %v1690, %v1689
    %v1705 = vpack.c.b16 %v1692, %v1691
    %v1706 = vpack.c.b16 %v1694, %v1693
    %v1707 = vpack.c.b16 %v1696, %v1695
    %v1708 = vpack.c.b16 %v1698, %v1697
    %v1709 = vpack.c.b16 %v1700, %v1699
    %v1710 = vpack.c.b16 %v1702, %v1701
    %1719 = vmatprep.subr.bf16.mxu0 0
    %1720 = vmatpush1.bf16.msra.mxu0 %v1710
    %1721 = vmatprep.subr.bf16.mxu0 0
    %1722 = vmatpush1.bf16.msra.mxu0 %v1709
    %1723 = vmatprep.subr.bf16.mxu0 0
    %1724 = vmatpush1.bf16.msra.mxu0 %v1708
    %1725 = vmatprep.subr.bf16.mxu0 0
    %1726 = vmatpush1.bf16.msra.mxu0 %v1707
    %1727 = vmatprep.subr.bf16.mxu0 0
    %1728 = vmatpush1.bf16.msra.mxu0 %v1706
    %1729 = vmatprep.subr.bf16.mxu0 0
    %1730 = vmatpush1.bf16.msra.mxu0 %v1705
    %1731 = vmatprep.subr.bf16.mxu0 0
    %1732 = vmatpush1.bf16.msra.mxu0 %v1704
    %1733 = vmatprep.subr.bf16.mxu0 0
    %1734 = vmatpush1.bf16.msra.mxu0 %v1703
    %1735 = vmatprep.subr.bf16.mxu0 0
    %1736 = vmatpush2.bf16.msra.mxu0 0
    %1737 = vmatprep.subr.bf16.mxu0 0
    %1738 = vmatpush2.bf16.msra.mxu0 0
    %1739 = vmatprep.subr.bf16.mxu0 0
    %1740 = vmatpush2.bf16.msra.mxu0 0
    %1741 = vmatprep.subr.bf16.mxu0 0
    %1742 = vmatpush2.bf16.msra.mxu0 0
    %1743 = vmatprep.subr.bf16.mxu0 0
    %1744 = vmatpush2.bf16.msra.mxu0 0
    %1745 = vmatprep.subr.bf16.mxu0 0
    %1746 = vmatpush2.bf16.msra.mxu0 0
    %1747 = vmatprep.subr.bf16.mxu0 0
    %1748 = vmatpush2.bf16.msra.mxu0 0
    %1749 = vmatprep.subr.bf16.mxu0 0
    %1750 = vmatpush2.bf16.msra.mxu0 0
    %1751 = vmatprep.mubr.bf16.mxu0 0
    %1752 = vmatmul.mubr.bf16.gmra.mxu0 %v1648
    %v1753 = vpop.f32.mrf.mxu0
    %v1754 = vadd.f32 %v1670, %v1753
    %v1755 = vpop.f32.mrf.mxu0
    %v1756 = vpop.f32.mrf.mxu0
    %v1757 = vpop.f32.mrf.mxu0
    %1758 = vdwg.mxu0
    %v1759 = vsel %vm186, %v1754, 0.0
    %1760 = vadd.xlane.f32.xlu0 %v1759
    %v1761 = vpop.xlane.xlu0 %1760
    %v1762 = vmul.f32 %v1754, %v1754
    %v1763 = vsel %vm186, %v1762, 0.0
    %1764 = vadd.xlane.f32.xlu0 %v1763
    %v1765 = vpop.xlane.xlu0 %1764
    %v1766 = vmul.f32 %v1761, 0.03125
    %v1767 = vmul.f32 %v1765, 0.03125
    %v1768 = vmul.f32 %v1766, %v1766
    %v1769 = vsub.f32 %v1767, %v1768
    %v1770 = vsub.f32 %v1754, %v1766
    %v1771 = vadd.f32 %v1769, 1e-05
    %v1772 = vrsqrt.pop %v1771
    %v1773 = vmul.f32 %v1770, %v1772
    %v1774 = vld [vmem:[#allocation5 + $0x9] sm:$0x1]
    %v1775 = vlaneseq
    %v1776 = vshrl.u32 %v1775, 7
    %v1777 = vsub.s32 0, %v1776
    %v1778 = vrot.slane %v1774, %v1777
    %v1779 = vmul.f32 %v1773, %v1778
    %v1780 = vld [vmem:[#allocation7 + $0x9] sm:$0x1]
    %v1781 = vlaneseq
    %v1782 = vshrl.u32 %v1781, 7
    %v1783 = vsub.s32 0, %v1782
    %v1784 = vrot.slane %v1780, %v1783
    %v1785 = vadd.f32 %v1779, %v1784
    %v1786 = vmax.f32 %v1785, 0.0
    %v1787 = vpack.c.bf16 %v1786, %v1786
    %s1788 = scalar_lea.vmem [#allocation2], 832
    %v1789 = vld [vmem:[%s1788] sm:$0xf]
    %v1790 = vld [vmem:[%s1788 + $0x4] sm:$0xf]
    %v1791 = vld [vmem:[%s1788 + $0x8] sm:$0xf]
    %v1792 = vld [vmem:[%s1788 + $0xc] sm:$0xf]
    %v1793 = vld [vmem:[%s1788 + $0x10] sm:$0xf]
    %v1794 = vld [vmem:[%s1788 + $0x14] sm:$0xf]
    %v1795 = vld [vmem:[%s1788 + $0x18] sm:$0xf]
    %v1796 = vld [vmem:[%s1788 + $0x1c] sm:$0xf]
    %v1797 = vld [vmem:[%s1788 + $0x20] sm:$0xf]
    %v1798 = vld [vmem:[%s1788 + $0x24] sm:$0xf]
    %v1799 = vld [vmem:[%s1788 + $0x28] sm:$0xf]
    %v1800 = vld [vmem:[%s1788 + $0x2c] sm:$0xf]
    %v1801 = vld [vmem:[%s1788 + $0x30] sm:$0xf]
    %v1802 = vld [vmem:[%s1788 + $0x34] sm:$0xf]
    %v1803 = vld [vmem:[%s1788 + $0x38] sm:$0xf]
    %v1804 = vld [vmem:[%s1788 + $0x3c] sm:$0xf]
    %v1805 = vld [vmem:[%s5 + $0xa] sm:$0x1]
    %v1806 = vlaneseq
    %v1807 = vshrl.u32 %v1806, 7
    %v1808 = vsub.s32 0, %v1807
    %v1809 = vrot.slane %v1805, %v1808
    %v1826 = vunpack.c.l.b16 %v1789
    %v1827 = vunpack.c.l.b16 %v1790
    %v1828 = vunpack.c.l.b16 %v1791
    %v1829 = vunpack.c.l.b16 %v1792
    %v1830 = vunpack.c.l.b16 %v1793
    %v1831 = vunpack.c.l.b16 %v1794
    %v1832 = vunpack.c.l.b16 %v1795
    %v1833 = vunpack.c.l.b16 %v1796
    %v1834 = vunpack.c.l.b16 %v1797
    %v1835 = vunpack.c.l.b16 %v1798
    %v1836 = vunpack.c.l.b16 %v1799
    %v1837 = vunpack.c.l.b16 %v1800
    %v1838 = vunpack.c.l.b16 %v1801
    %v1839 = vunpack.c.l.b16 %v1802
    %v1840 = vunpack.c.l.b16 %v1803
    %v1841 = vunpack.c.l.b16 %v1804
    %v1842 = vpack.c.b16 %v1827, %v1826
    %v1843 = vpack.c.b16 %v1829, %v1828
    %v1844 = vpack.c.b16 %v1831, %v1830
    %v1845 = vpack.c.b16 %v1833, %v1832
    %v1846 = vpack.c.b16 %v1835, %v1834
    %v1847 = vpack.c.b16 %v1837, %v1836
    %v1848 = vpack.c.b16 %v1839, %v1838
    %v1849 = vpack.c.b16 %v1841, %v1840
    %1858 = vmatprep.subr.bf16.mxu0 0
    %1859 = vmatpush1.bf16.msra.mxu0 %v1849
    %1860 = vmatprep.subr.bf16.mxu0 0
    %1861 = vmatpush1.bf16.msra.mxu0 %v1848
    %1862 = vmatprep.subr.bf16.mxu0 0
    %1863 = vmatpush1.bf16.msra.mxu0 %v1847
    %1864 = vmatprep.subr.bf16.mxu0 0
    %1865 = vmatpush1.bf16.msra.mxu0 %v1846
    %1866 = vmatprep.subr.bf16.mxu0 0
    %1867 = vmatpush1.bf16.msra.mxu0 %v1845
    %1868 = vmatprep.subr.bf16.mxu0 0
    %1869 = vmatpush1.bf16.msra.mxu0 %v1844
    %1870 = vmatprep.subr.bf16.mxu0 0
    %1871 = vmatpush1.bf16.msra.mxu0 %v1843
    %1872 = vmatprep.subr.bf16.mxu0 0
    %1873 = vmatpush1.bf16.msra.mxu0 %v1842
    %1874 = vmatprep.subr.bf16.mxu0 0
    %1875 = vmatpush2.bf16.msra.mxu0 0
    %1876 = vmatprep.subr.bf16.mxu0 0
    %1877 = vmatpush2.bf16.msra.mxu0 0
    %1878 = vmatprep.subr.bf16.mxu0 0
    %1879 = vmatpush2.bf16.msra.mxu0 0
    %1880 = vmatprep.subr.bf16.mxu0 0
    %1881 = vmatpush2.bf16.msra.mxu0 0
    %1882 = vmatprep.subr.bf16.mxu0 0
    %1883 = vmatpush2.bf16.msra.mxu0 0
    %1884 = vmatprep.subr.bf16.mxu0 0
    %1885 = vmatpush2.bf16.msra.mxu0 0
    %1886 = vmatprep.subr.bf16.mxu0 0
    %1887 = vmatpush2.bf16.msra.mxu0 0
    %1888 = vmatprep.subr.bf16.mxu0 0
    %1889 = vmatpush2.bf16.msra.mxu0 0
    %1890 = vmatprep.mubr.bf16.mxu0 0
    %1891 = vmatmul.mubr.bf16.gmra.mxu0 %v1787
    %v1892 = vpop.f32.mrf.mxu0
    %v1893 = vadd.f32 %v1809, %v1892
    %v1894 = vpop.f32.mrf.mxu0
    %v1895 = vpop.f32.mrf.mxu0
    %v1896 = vpop.f32.mrf.mxu0
    %1897 = vdwg.mxu0
    %1898 = vst [vmem:[#allocation8] sm:$0x3] %v1893
    // Predicated region
    $region46: #{critic_forward.1} parent=1 // pred_check
      _
    $region47: #{critic_forward.1} parent=1 // pred_check_branch
      %1900 = sbr.rel (0) target = $region49
    $region48: #{critic_forward.1} parent=1 // pred_region
      %s1902 = ssub.s32 32, 32
      %1903 = vsyncadd [#allocation4], %s1902
      %s1905 = sshll.u32 [#allocation8], 4
      %s1906 = int_to_ptr.vmem [resolvable:$true] %s1905
      %1908 = dma.vmem_to_hbm [thread:$0]  %s1906, 32, %s8, [#allocation4]
    $region49: #{critic_forward.1} parent=1 // pred_fallthru
      _
    // Predicated region
    $region50: #{critic_forward.1} parent=1 // pred_check
      _
    $region51: #{critic_forward.1} parent=1 // pred_check_branch
      %1910 = sbr.rel (0) target = $region53
    $region52: #{critic_forward.1} parent=1 // pred_region
      %1911 = dma.done [#allocation4], 32
    $region53: #{critic_forward.1} parent=1 // pred_fallthru
      _
    %1912 = vsyncpa [#allocation3], 1
    %1913 = vsyncpa [#allocation6], 1
    %1914 = vsyncpa [#allocation4], 1

</llo_original>
